<compile_context>
chip_gen: v6e
topology: v6e:2x2x1
jax: 0.10.0
libtpu: 0.0.40
codegen_flags: <defaults>
</compile_context>

<pallas_src>
import math
import functools

import jax
import jax.numpy as jnp
from jax.experimental import pallas as pl
from jax.experimental.pallas import tpu as pltpu


# ---------------------------------------------------------------------------
# Fused Pallas kernel: pos-add + 5x(conv/ReLU/LN) + linear
# ---------------------------------------------------------------------------

def fused_pitch_kernel(xs_ref, pos_ref, alpha_ref,
                       w_ref, b_ref, g_ref, be_ref,
                       lw_ref, lb_ref, o_ref,
                       *, n_layers, K, T, C, pad):
    """One batch element per grid step; everything stays VMEM-resident.

    xs_ref:  (1, T, C)        input, channel-padded from idim to C
    pos_ref: (1, T, C)        sinusoidal positional embedding (channel-padded)
    alpha_ref: (1, 1)  SMEM   pos_embed_alpha scalar
    w_ref:   (L, K*C, C)      stacked im2col conv weights (layer 0 zero-padded)
    b_ref:   (L, 1, C)        conv biases
    g_ref:   (L, 1, C)        LayerNorm gammas
    be_ref:  (L, 1, C)        LayerNorm betas
    lw_ref:  (C, OP)          final linear weight, lane-padded to OP=128 cols
    lb_ref:  (1, OP)          final linear bias, lane-padded
    o_ref:   (1, T, OP)       lane-dense output (sliced to odim in the wrapper)
    """
    alpha = alpha_ref[0, 0]
    # xs = xs + alpha * positions  (fused into the kernel; free VPU filler)
    h = xs_ref[0] + alpha * pos_ref[0]                       # (T, C) f32

    zero_pad = jnp.zeros((pad, C), jnp.float32)
    for l in range(n_layers):                                # static unroll, L=5
        # ConstantPad1d((pad, pad), 0) on VMEM-resident data
        xp = jnp.concatenate([zero_pad, h, zero_pad], axis=0)        # (T+2*pad, C)
        # im2col: one matmul with contraction K*C instead of K skinny matmuls
        x_unf = jnp.concatenate([xp[k:k + T, :] for k in range(K)],
                                axis=-1)                              # (T, K*C)
        acc = jnp.dot(x_unf, w_ref[l],
                      preferred_element_type=jnp.float32) + b_ref[l]  # (T, C)
        acc = jnp.maximum(acc, 0.0)                                   # ReLU
        # LayerNorm over channels (eps=1e-12, biased variance, as in torch ref)
        mean = jnp.mean(acc, axis=-1, keepdims=True)
        var = jnp.mean(jnp.square(acc - mean), axis=-1, keepdims=True)
        h = (acc - mean) * jax.lax.rsqrt(var + 1e-12) * g_ref[l] + be_ref[l]
        # Dropout: eval-mode no-op.

    # Final Linear(n_chans -> odim), written lane-dense (OP=128 padded columns)
    out = jnp.dot(h, lw_ref[...],
                  preferred_element_type=jnp.float32) + lb_ref[...]   # (T, OP)
    o_ref[0] = out.astype(o_ref.dtype)


# ---------------------------------------------------------------------------
# Glue: sinusoidal positional embedding table, param init, forward
# ---------------------------------------------------------------------------

def sinusoidal_table(num_embeddings, dim, padding_idx=0):
    """fairseq-style sinusoidal embedding table."""
    half = dim // 2
    scale = math.log(10000.0) / (half - 1)
    freqs = jnp.exp(jnp.arange(half, dtype=jnp.float32) * -scale)
    ang = jnp.arange(num_embeddings, dtype=jnp.float32)[:, None] * freqs[None, :]
    emb = jnp.concatenate([jnp.sin(ang), jnp.cos(ang)], axis=1)
    if dim % 2 == 1:
        emb = jnp.concatenate(
            [emb, jnp.zeros((num_embeddings, 1), jnp.float32)], axis=1)
    if padding_idx is not None:
        emb = emb.at[padding_idx].set(0.0)
    return emb


def init_params(key, idim, n_layers, n_chans, odim, kernel_size,
                init_size=4096, out_pad=128):
    """Parameters pre-packed for the fused kernel."""
    K, C = kernel_size, n_chans
    w_l, b_l, g_l, be_l = [], [], [], []
    for idx in range(n_layers):
        in_ch = idim if idx == 0 else C
        key, kw, kb = jax.random.split(key, 3)
        w = 0.1 * jax.random.normal(kw, (K, in_ch, C), jnp.float32)
        if in_ch < C:                      # zero-pad layer-0 input channels
            w = jnp.pad(w, ((0, 0), (0, C - in_ch), (0, 0)))
        w_l.append(w.reshape(K * C, C))    # im2col layout: row = k*C + cin
        b_l.append(0.1 * jax.random.normal(kb, (1, C), jnp.float32))
        g_l.append(jnp.ones((1, C), jnp.float32))
        be_l.append(jnp.zeros((1, C), jnp.float32))

    key, kw, kb = jax.random.split(key, 3)
    lin_w = 0.1 * jax.random.normal(kw, (C, odim), jnp.float32)
    lin_b = 0.1 * jax.random.normal(kb, (1, odim), jnp.float32)

    return {
        "w": jnp.stack(w_l),                                    # (L, K*C, C)
        "b": jnp.stack(b_l),                                    # (L, 1, C)
        "g": jnp.stack(g_l),                                    # (L, 1, C)
        "beta": jnp.stack(be_l),                                # (L, 1, C)
        # lane-pad the linear to 128 output columns -> unmasked stores
        "lin_w": jnp.pad(lin_w, ((0, 0), (0, out_pad - odim))),  # (C, 128)
        "lin_b": jnp.pad(lin_b, ((0, 0), (0, out_pad - odim))),  # (1, 128)
        "pos_embed_alpha": jnp.ones((1, 1), jnp.float32),
        "pos_table": sinusoidal_table(init_size, idim, padding_idx=0),
    }


def pitch_predictor_forward(xs, params, *, kernel_size, odim):
    """xs: [B, T, idim] -> [B, T, odim]."""
    B, T, idim = xs.shape
    L, KC, C = params["w"].shape
    K = kernel_size
    pad = (K - 1) // 2
    OP = params["lin_w"].shape[1]

    # Sinusoidal positional embedding (fairseq make_positions on xs[..., 0]).
    # TODO(synk): data-dependent table gather stays in XLA (no clean in-kernel
    # gather needed at this size); only the add + alpha scale is fused.
    mask = (xs[..., 0] != 0).astype(jnp.int32)
    positions = jnp.cumsum(mask, axis=1) * mask
    pos_emb = params["pos_table"][positions]                    # (B, T, idim)

    # One-time channel pad idim -> C so all layers share the stacked weights
    # (layer-0 weight rows for the padded channels are zero).
    xs_p = jnp.pad(xs, ((0, 0), (0, 0), (0, C - idim)))
    pos_p = jnp.pad(pos_emb, ((0, 0), (0, 0), (0, C - idim)))

    kern = functools.partial(fused_pitch_kernel,
                             n_layers=L, K=K, T=T, C=C, pad=pad)

    out = pl.pallas_call(
        kern,
        out_shape=jax.ShapeDtypeStruct((B, T, OP), jnp.float32),
        grid_spec=pltpu.PrefetchScalarGridSpec(
            num_scalar_prefetch=0,
            grid=(B,),
            in_specs=[
                pl.BlockSpec((1, T, C), lambda i: (i, 0, 0)),      # xs
                pl.BlockSpec((1, T, C), lambda i: (i, 0, 0)),      # pos_emb
                pl.BlockSpec(memory_space=pltpu.MemorySpace.SMEM),  # alpha
                pl.BlockSpec((L, KC, C), lambda i: (0, 0, 0)),     # conv W
                pl.BlockSpec((L, 1, C), lambda i: (0, 0, 0)),      # conv b
                pl.BlockSpec((L, 1, C), lambda i: (0, 0, 0)),      # LN gamma
                pl.BlockSpec((L, 1, C), lambda i: (0, 0, 0)),      # LN beta
                pl.BlockSpec((C, OP), lambda i: (0, 0)),           # lin W (padded)
                pl.BlockSpec((1, OP), lambda i: (0, 0)),           # lin b (padded)
            ],
            out_specs=pl.BlockSpec((1, T, OP), lambda i: (i, 0, 0)),
        ),
        compiler_params=pltpu.CompilerParams(
            dimension_semantics=("parallel",)),      # B=2 -> both v7x TCs busy
    )(xs_p, pos_p, params["pos_embed_alpha"], params["w"], params["b"],
      params["g"], params["beta"], params["lin_w"], params["lin_b"])

    return out[:, :, :odim]


# ---------------------------------------------------------------------------
# Pure-JAX reference (same packed params) for a correctness sanity check
# ---------------------------------------------------------------------------

def reference_forward(xs, params, *, kernel_size, odim):
    B, T, idim = xs.shape
    L, KC, C = params["w"].shape
    K = kernel_size
    pad = (K - 1) // 2
    mask = (xs[..., 0] != 0).astype(jnp.int32)
    positions = jnp.cumsum(mask, axis=1) * mask
    pos_emb = params["pos_table"][positions]
    h = xs + params["pos_embed_alpha"][0, 0] * pos_emb
    h = jnp.pad(h, ((0, 0), (0, 0), (0, C - idim)))
    for l in range(L):
        w = params["w"][l].reshape(K, C, C)
        xp = jnp.pad(h, ((0, 0), (pad, pad), (0, 0)))
        acc = sum(jnp.einsum("btc,cd->btd", xp[:, k:k + T, :], w[k])
                  for k in range(K)) + params["b"][l][None]
        acc = jnp.maximum(acc, 0.0)
        mean = acc.mean(-1, keepdims=True)
        var = jnp.square(acc - mean).mean(-1, keepdims=True)
        h = (acc - mean) * jax.lax.rsqrt(var + 1e-12) \
            * params["g"][l][None] + params["beta"][l][None]
    out = jnp.einsum("btc,cd->btd", h, params["lin_w"]) + params["lin_b"][None]
    return out[..., :odim]


if __name__ == "__main__":
    B, T, idim = 2, 16, 16
    n_layers, n_chans, odim, kernel_size = 5, 32, 2, 5

    key = jax.random.PRNGKey(0)
    key, kx = jax.random.split(key)
    params = init_params(key, idim, n_layers, n_chans, odim, kernel_size)
    xs = jax.random.normal(kx, (B, T, idim), jnp.float32)

    out = pitch_predictor_forward(xs, params, kernel_size=kernel_size, odim=odim)
    out = jax.block_until_ready(out)

    assert out.shape == (B, T, odim), out.shape
    assert bool(jnp.all(jnp.isfinite(out)))

    ref = reference_forward(xs, params, kernel_size=kernel_size, odim=odim)
    err = float(jnp.max(jnp.abs(out - ref)))
    assert err < 1e-3, f"mismatch vs reference: {err}"

    print("KERNEL_OK")
</pallas_src>

<mosaic_0001>
module attributes {stable_mosaic.version = 11 : i64} {
  func.func @fused_pitch_kernel(%arg0: i32, %arg1: memref<1x16x32xf32, #tpu.memory_space<vmem>>, %arg2: memref<1x16x32xf32, #tpu.memory_space<vmem>>, %arg3: memref<1x1xf32, #tpu.memory_space<smem>>, %arg4: memref<5x160x32xf32, #tpu.memory_space<vmem>>, %arg5: memref<5x1x32xf32, #tpu.memory_space<vmem>>, %arg6: memref<5x1x32xf32, #tpu.memory_space<vmem>>, %arg7: memref<5x1x32xf32, #tpu.memory_space<vmem>>, %arg8: memref<32x128xf32, #tpu.memory_space<vmem>>, %arg9: memref<1x128xf32, #tpu.memory_space<vmem>>, %arg10: memref<1x16x128xf32, #tpu.memory_space<vmem>>) attributes {dimension_semantics = [#tpu.dimension_semantics<parallel>], iteration_bounds = array<i64: 2>, scalar_prefetch = 0 : i64, scratch_operands = 0 : i64, tpu.core_type = #tpu.core_type<tc>, window_params = [{transform_indices = @transform_0, window_bounds = array<i64: 1, 16, 32>}, {transform_indices = @transform_1, window_bounds = array<i64: 1, 16, 32>}, {transform_indices = @transform_2, window_bounds = array<i64: 1, 1>}, {pipeline_mode = #tpu.pipeline_mode<synchronous>, transform_indices = @transform_3, window_bounds = array<i64: 5, 160, 32>}, {pipeline_mode = #tpu.pipeline_mode<synchronous>, transform_indices = @transform_4, window_bounds = array<i64: 5, 1, 32>}, {pipeline_mode = #tpu.pipeline_mode<synchronous>, transform_indices = @transform_5, window_bounds = array<i64: 5, 1, 32>}, {pipeline_mode = #tpu.pipeline_mode<synchronous>, transform_indices = @transform_6, window_bounds = array<i64: 5, 1, 32>}, {pipeline_mode = #tpu.pipeline_mode<synchronous>, transform_indices = @transform_7, window_bounds = array<i64: 32, 128>}, {pipeline_mode = #tpu.pipeline_mode<synchronous>, transform_indices = @transform_8, window_bounds = array<i64: 1, 128>}, {transform_indices = @transform_9, window_bounds = array<i64: 1, 16, 128>}]} {
    %c0 = arith.constant 0 : index
    %c0_0 = arith.constant 0 : index
    %0 = memref.load %arg3[%c0, %c0_0] : memref<1x1xf32, #tpu.memory_space<smem>>
    %c0_1 = arith.constant 0 : index
    %c0_2 = arith.constant 0 : index
    %c0_3 = arith.constant 0 : index
    %1 = vector.load %arg1[%c0_1, %c0_2, %c0_3] : memref<1x16x32xf32, #tpu.memory_space<vmem>>, vector<1x16x32xf32>
    %2 = vector.shape_cast %1 : vector<1x16x32xf32> to vector<16x32xf32>
    %c0_4 = arith.constant 0 : index
    %c0_5 = arith.constant 0 : index
    %c0_6 = arith.constant 0 : index
    %3 = vector.load %arg2[%c0_4, %c0_5, %c0_6] : memref<1x16x32xf32, #tpu.memory_space<vmem>>, vector<1x16x32xf32>
    %4 = vector.shape_cast %3 : vector<1x16x32xf32> to vector<16x32xf32>
    %5 = vector.broadcast %0 : f32 to vector<16x32xf32>
    %6 = arith.mulf %5, %4 : vector<16x32xf32>
    %7 = arith.addf %2, %6 : vector<16x32xf32>
    %cst = arith.constant 0.000000e+00 : f32
    %8 = vector.broadcast %cst : f32 to vector<2x32xf32>
    %9 = tpu.concatenate %8, %7, %8 in 0 : vector<2x32xf32>, vector<16x32xf32>, vector<2x32xf32> -> vector<20x32xf32>
    %10 = vector.extract_strided_slice %9 {offsets = [0, 0], sizes = [16, 32], strides = [1, 1]} : vector<20x32xf32> to vector<16x32xf32>
    %11 = vector.extract_strided_slice %9 {offsets = [1, 0], sizes = [16, 32], strides = [1, 1]} : vector<20x32xf32> to vector<16x32xf32>
    %12 = vector.extract_strided_slice %9 {offsets = [2, 0], sizes = [16, 32], strides = [1, 1]} : vector<20x32xf32> to vector<16x32xf32>
    %13 = vector.extract_strided_slice %9 {offsets = [3, 0], sizes = [16, 32], strides = [1, 1]} : vector<20x32xf32> to vector<16x32xf32>
    %14 = vector.extract_strided_slice %9 {offsets = [4, 0], sizes = [16, 32], strides = [1, 1]} : vector<20x32xf32> to vector<16x32xf32>
    %15 = tpu.concatenate %10, %11, %12, %13, %14 in 1 : vector<16x32xf32>, vector<16x32xf32>, vector<16x32xf32>, vector<16x32xf32>, vector<16x32xf32> -> vector<16x160xf32>
    %c0_7 = arith.constant 0 : index
    %c0_8 = arith.constant 0 : index
    %c0_9 = arith.constant 0 : index
    %16 = vector.load %arg4[%c0_7, %c0_8, %c0_9] : memref<5x160x32xf32, #tpu.memory_space<vmem>>, vector<1x160x32xf32>
    %17 = vector.shape_cast %16 : vector<1x160x32xf32> to vector<160x32xf32>
    %cst_10 = arith.constant dense<0.000000e+00> : vector<16x32xf32>
    %18 = tpu.matmul %15, %17, %cst_10 {dimension_numbers = #tpu.dot_dimension_numbers<[1], [0], [0], [1], [0, 0, 1, 1], [], []>} : vector<16x160xf32>, vector<160x32xf32>, vector<16x32xf32> -> vector<16x32xf32>
    %c0_11 = arith.constant 0 : index
    %c0_12 = arith.constant 0 : index
    %c0_13 = arith.constant 0 : index
    %19 = vector.load %arg5[%c0_11, %c0_12, %c0_13] : memref<5x1x32xf32, #tpu.memory_space<vmem>>, vector<1x1x32xf32>
    %20 = vector.shape_cast %19 : vector<1x1x32xf32> to vector<1x32xf32>
    %21 = vector.broadcast %20 : vector<1x32xf32> to vector<16x32xf32>
    %22 = arith.addf %18, %21 : vector<16x32xf32>
    %cst_14 = arith.constant 0.000000e+00 : f32
    %23 = vector.broadcast %cst_14 : f32 to vector<16x32xf32>
    %24 = arith.maximumf %22, %23 : vector<16x32xf32>
    %cst_15 = arith.constant dense<0.000000e+00> : vector<16xf32>
    %25 = vector.multi_reduction <add>, %24, %cst_15 [1] : vector<16x32xf32> to vector<16xf32>
    %26 = vector.shape_cast %25 : vector<16xf32> to vector<16x1xf32>
    %cst_16 = arith.constant 3.200000e+01 : f32
    %27 = vector.broadcast %cst_16 : f32 to vector<16x1xf32>
    %28 = arith.divf %26, %27 : vector<16x1xf32>
    %29 = vector.broadcast %28 : vector<16x1xf32> to vector<16x32xf32>
    %30 = arith.subf %24, %29 : vector<16x32xf32>
    %31 = arith.mulf %30, %30 : vector<16x32xf32>
    %cst_17 = arith.constant dense<0.000000e+00> : vector<16xf32>
    %32 = vector.multi_reduction <add>, %31, %cst_17 [1] : vector<16x32xf32> to vector<16xf32>
    %33 = vector.shape_cast %32 : vector<16xf32> to vector<16x1xf32>
    %cst_18 = arith.constant 3.200000e+01 : f32
    %34 = vector.broadcast %cst_18 : f32 to vector<16x1xf32>
    %35 = arith.divf %33, %34 : vector<16x1xf32>
    %36 = vector.broadcast %28 : vector<16x1xf32> to vector<16x32xf32>
    %37 = arith.subf %24, %36 : vector<16x32xf32>
    %cst_19 = arith.constant 9.99999996E-13 : f32
    %38 = vector.broadcast %cst_19 : f32 to vector<16x1xf32>
    %39 = arith.addf %35, %38 : vector<16x1xf32>
    %40 = math.rsqrt %39 : vector<16x1xf32>
    %41 = vector.broadcast %40 : vector<16x1xf32> to vector<16x32xf32>
    %42 = arith.mulf %37, %41 : vector<16x32xf32>
    %c0_20 = arith.constant 0 : index
    %c0_21 = arith.constant 0 : index
    %c0_22 = arith.constant 0 : index
    %43 = vector.load %arg6[%c0_20, %c0_21, %c0_22] : memref<5x1x32xf32, #tpu.memory_space<vmem>>, vector<1x1x32xf32>
    %44 = vector.shape_cast %43 : vector<1x1x32xf32> to vector<1x32xf32>
    %45 = vector.broadcast %44 : vector<1x32xf32> to vector<16x32xf32>
    %46 = arith.mulf %42, %45 : vector<16x32xf32>
    %c0_23 = arith.constant 0 : index
    %c0_24 = arith.constant 0 : index
    %c0_25 = arith.constant 0 : index
    %47 = vector.load %arg7[%c0_23, %c0_24, %c0_25] : memref<5x1x32xf32, #tpu.memory_space<vmem>>, vector<1x1x32xf32>
    %48 = vector.shape_cast %47 : vector<1x1x32xf32> to vector<1x32xf32>
    %49 = vector.broadcast %48 : vector<1x32xf32> to vector<16x32xf32>
    %50 = arith.addf %46, %49 : vector<16x32xf32>
    %51 = tpu.concatenate %8, %50, %8 in 0 : vector<2x32xf32>, vector<16x32xf32>, vector<2x32xf32> -> vector<20x32xf32>
    %52 = vector.extract_strided_slice %51 {offsets = [0, 0], sizes = [16, 32], strides = [1, 1]} : vector<20x32xf32> to vector<16x32xf32>
    %53 = vector.extract_strided_slice %51 {offsets = [1, 0], sizes = [16, 32], strides = [1, 1]} : vector<20x32xf32> to vector<16x32xf32>
    %54 = vector.extract_strided_slice %51 {offsets = [2, 0], sizes = [16, 32], strides = [1, 1]} : vector<20x32xf32> to vector<16x32xf32>
    %55 = vector.extract_strided_slice %51 {offsets = [3, 0], sizes = [16, 32], strides = [1, 1]} : vector<20x32xf32> to vector<16x32xf32>
    %56 = vector.extract_strided_slice %51 {offsets = [4, 0], sizes = [16, 32], strides = [1, 1]} : vector<20x32xf32> to vector<16x32xf32>
    %57 = tpu.concatenate %52, %53, %54, %55, %56 in 1 : vector<16x32xf32>, vector<16x32xf32>, vector<16x32xf32>, vector<16x32xf32>, vector<16x32xf32> -> vector<16x160xf32>
    %c1 = arith.constant 1 : index
    %c0_26 = arith.constant 0 : index
    %c0_27 = arith.constant 0 : index
    %58 = vector.load %arg4[%c1, %c0_26, %c0_27] : memref<5x160x32xf32, #tpu.memory_space<vmem>>, vector<1x160x32xf32>
    %59 = vector.shape_cast %58 : vector<1x160x32xf32> to vector<160x32xf32>
    %cst_28 = arith.constant dense<0.000000e+00> : vector<16x32xf32>
    %60 = tpu.matmul %57, %59, %cst_28 {dimension_numbers = #tpu.dot_dimension_numbers<[1], [0], [0], [1], [0, 0, 1, 1], [], []>} : vector<16x160xf32>, vector<160x32xf32>, vector<16x32xf32> -> vector<16x32xf32>
    %c1_29 = arith.constant 1 : index
    %c0_30 = arith.constant 0 : index
    %c0_31 = arith.constant 0 : index
    %61 = vector.load %arg5[%c1_29, %c0_30, %c0_31] : memref<5x1x32xf32, #tpu.memory_space<vmem>>, vector<1x1x32xf32>
    %62 = vector.shape_cast %61 : vector<1x1x32xf32> to vector<1x32xf32>
    %63 = vector.broadcast %62 : vector<1x32xf32> to vector<16x32xf32>
    %64 = arith.addf %60, %63 : vector<16x32xf32>
    %cst_32 = arith.constant 0.000000e+00 : f32
    %65 = vector.broadcast %cst_32 : f32 to vector<16x32xf32>
    %66 = arith.maximumf %64, %65 : vector<16x32xf32>
    %cst_33 = arith.constant dense<0.000000e+00> : vector<16xf32>
    %67 = vector.multi_reduction <add>, %66, %cst_33 [1] : vector<16x32xf32> to vector<16xf32>
    %68 = vector.shape_cast %67 : vector<16xf32> to vector<16x1xf32>
    %cst_34 = arith.constant 3.200000e+01 : f32
    %69 = vector.broadcast %cst_34 : f32 to vector<16x1xf32>
    %70 = arith.divf %68, %69 : vector<16x1xf32>
    %71 = vector.broadcast %70 : vector<16x1xf32> to vector<16x32xf32>
    %72 = arith.subf %66, %71 : vector<16x32xf32>
    %73 = arith.mulf %72, %72 : vector<16x32xf32>
    %cst_35 = arith.constant dense<0.000000e+00> : vector<16xf32>
    %74 = vector.multi_reduction <add>, %73, %cst_35 [1] : vector<16x32xf32> to vector<16xf32>
    %75 = vector.shape_cast %74 : vector<16xf32> to vector<16x1xf32>
    %cst_36 = arith.constant 3.200000e+01 : f32
    %76 = vector.broadcast %cst_36 : f32 to vector<16x1xf32>
    %77 = arith.divf %75, %76 : vector<16x1xf32>
    %78 = vector.broadcast %70 : vector<16x1xf32> to vector<16x32xf32>
    %79 = arith.subf %66, %78 : vector<16x32xf32>
    %cst_37 = arith.constant 9.99999996E-13 : f32
    %80 = vector.broadcast %cst_37 : f32 to vector<16x1xf32>
    %81 = arith.addf %77, %80 : vector<16x1xf32>
    %82 = math.rsqrt %81 : vector<16x1xf32>
    %83 = vector.broadcast %82 : vector<16x1xf32> to vector<16x32xf32>
    %84 = arith.mulf %79, %83 : vector<16x32xf32>
    %c1_38 = arith.constant 1 : index
    %c0_39 = arith.constant 0 : index
    %c0_40 = arith.constant 0 : index
    %85 = vector.load %arg6[%c1_38, %c0_39, %c0_40] : memref<5x1x32xf32, #tpu.memory_space<vmem>>, vector<1x1x32xf32>
    %86 = vector.shape_cast %85 : vector<1x1x32xf32> to vector<1x32xf32>
    %87 = vector.broadcast %86 : vector<1x32xf32> to vector<16x32xf32>
    %88 = arith.mulf %84, %87 : vector<16x32xf32>
    %c1_41 = arith.constant 1 : index
    %c0_42 = arith.constant 0 : index
    %c0_43 = arith.constant 0 : index
    %89 = vector.load %arg7[%c1_41, %c0_42, %c0_43] : memref<5x1x32xf32, #tpu.memory_space<vmem>>, vector<1x1x32xf32>
    %90 = vector.shape_cast %89 : vector<1x1x32xf32> to vector<1x32xf32>
    %91 = vector.broadcast %90 : vector<1x32xf32> to vector<16x32xf32>
    %92 = arith.addf %88, %91 : vector<16x32xf32>
    %93 = tpu.concatenate %8, %92, %8 in 0 : vector<2x32xf32>, vector<16x32xf32>, vector<2x32xf32> -> vector<20x32xf32>
    %94 = vector.extract_strided_slice %93 {offsets = [0, 0], sizes = [16, 32], strides = [1, 1]} : vector<20x32xf32> to vector<16x32xf32>
    %95 = vector.extract_strided_slice %93 {offsets = [1, 0], sizes = [16, 32], strides = [1, 1]} : vector<20x32xf32> to vector<16x32xf32>
    %96 = vector.extract_strided_slice %93 {offsets = [2, 0], sizes = [16, 32], strides = [1, 1]} : vector<20x32xf32> to vector<16x32xf32>
    %97 = vector.extract_strided_slice %93 {offsets = [3, 0], sizes = [16, 32], strides = [1, 1]} : vector<20x32xf32> to vector<16x32xf32>
    %98 = vector.extract_strided_slice %93 {offsets = [4, 0], sizes = [16, 32], strides = [1, 1]} : vector<20x32xf32> to vector<16x32xf32>
    %99 = tpu.concatenate %94, %95, %96, %97, %98 in 1 : vector<16x32xf32>, vector<16x32xf32>, vector<16x32xf32>, vector<16x32xf32>, vector<16x32xf32> -> vector<16x160xf32>
    %c2 = arith.constant 2 : index
    %c0_44 = arith.constant 0 : index
    %c0_45 = arith.constant 0 : index
    %100 = vector.load %arg4[%c2, %c0_44, %c0_45] : memref<5x160x32xf32, #tpu.memory_space<vmem>>, vector<1x160x32xf32>
    %101 = vector.shape_cast %100 : vector<1x160x32xf32> to vector<160x32xf32>
    %cst_46 = arith.constant dense<0.000000e+00> : vector<16x32xf32>
    %102 = tpu.matmul %99, %101, %cst_46 {dimension_numbers = #tpu.dot_dimension_numbers<[1], [0], [0], [1], [0, 0, 1, 1], [], []>} : vector<16x160xf32>, vector<160x32xf32>, vector<16x32xf32> -> vector<16x32xf32>
    %c2_47 = arith.constant 2 : index
    %c0_48 = arith.constant 0 : index
    %c0_49 = arith.constant 0 : index
    %103 = vector.load %arg5[%c2_47, %c0_48, %c0_49] : memref<5x1x32xf32, #tpu.memory_space<vmem>>, vector<1x1x32xf32>
    %104 = vector.shape_cast %103 : vector<1x1x32xf32> to vector<1x32xf32>
    %105 = vector.broadcast %104 : vector<1x32xf32> to vector<16x32xf32>
    %106 = arith.addf %102, %105 : vector<16x32xf32>
    %cst_50 = arith.constant 0.000000e+00 : f32
    %107 = vector.broadcast %cst_50 : f32 to vector<16x32xf32>
    %108 = arith.maximumf %106, %107 : vector<16x32xf32>
    %cst_51 = arith.constant dense<0.000000e+00> : vector<16xf32>
    %109 = vector.multi_reduction <add>, %108, %cst_51 [1] : vector<16x32xf32> to vector<16xf32>
    %110 = vector.shape_cast %109 : vector<16xf32> to vector<16x1xf32>
    %cst_52 = arith.constant 3.200000e+01 : f32
    %111 = vector.broadcast %cst_52 : f32 to vector<16x1xf32>
    %112 = arith.divf %110, %111 : vector<16x1xf32>
    %113 = vector.broadcast %112 : vector<16x1xf32> to vector<16x32xf32>
    %114 = arith.subf %108, %113 : vector<16x32xf32>
    %115 = arith.mulf %114, %114 : vector<16x32xf32>
    %cst_53 = arith.constant dense<0.000000e+00> : vector<16xf32>
    %116 = vector.multi_reduction <add>, %115, %cst_53 [1] : vector<16x32xf32> to vector<16xf32>
    %117 = vector.shape_cast %116 : vector<16xf32> to vector<16x1xf32>
    %cst_54 = arith.constant 3.200000e+01 : f32
    %118 = vector.broadcast %cst_54 : f32 to vector<16x1xf32>
    %119 = arith.divf %117, %118 : vector<16x1xf32>
    %120 = vector.broadcast %112 : vector<16x1xf32> to vector<16x32xf32>
    %121 = arith.subf %108, %120 : vector<16x32xf32>
    %cst_55 = arith.constant 9.99999996E-13 : f32
    %122 = vector.broadcast %cst_55 : f32 to vector<16x1xf32>
    %123 = arith.addf %119, %122 : vector<16x1xf32>
    %124 = math.rsqrt %123 : vector<16x1xf32>
    %125 = vector.broadcast %124 : vector<16x1xf32> to vector<16x32xf32>
    %126 = arith.mulf %121, %125 : vector<16x32xf32>
    %c2_56 = arith.constant 2 : index
    %c0_57 = arith.constant 0 : index
    %c0_58 = arith.constant 0 : index
    %127 = vector.load %arg6[%c2_56, %c0_57, %c0_58] : memref<5x1x32xf32, #tpu.memory_space<vmem>>, vector<1x1x32xf32>
    %128 = vector.shape_cast %127 : vector<1x1x32xf32> to vector<1x32xf32>
    %129 = vector.broadcast %128 : vector<1x32xf32> to vector<16x32xf32>
    %130 = arith.mulf %126, %129 : vector<16x32xf32>
    %c2_59 = arith.constant 2 : index
    %c0_60 = arith.constant 0 : index
    %c0_61 = arith.constant 0 : index
    %131 = vector.load %arg7[%c2_59, %c0_60, %c0_61] : memref<5x1x32xf32, #tpu.memory_space<vmem>>, vector<1x1x32xf32>
    %132 = vector.shape_cast %131 : vector<1x1x32xf32> to vector<1x32xf32>
    %133 = vector.broadcast %132 : vector<1x32xf32> to vector<16x32xf32>
    %134 = arith.addf %130, %133 : vector<16x32xf32>
    %135 = tpu.concatenate %8, %134, %8 in 0 : vector<2x32xf32>, vector<16x32xf32>, vector<2x32xf32> -> vector<20x32xf32>
    %136 = vector.extract_strided_slice %135 {offsets = [0, 0], sizes = [16, 32], strides = [1, 1]} : vector<20x32xf32> to vector<16x32xf32>
    %137 = vector.extract_strided_slice %135 {offsets = [1, 0], sizes = [16, 32], strides = [1, 1]} : vector<20x32xf32> to vector<16x32xf32>
    %138 = vector.extract_strided_slice %135 {offsets = [2, 0], sizes = [16, 32], strides = [1, 1]} : vector<20x32xf32> to vector<16x32xf32>
    %139 = vector.extract_strided_slice %135 {offsets = [3, 0], sizes = [16, 32], strides = [1, 1]} : vector<20x32xf32> to vector<16x32xf32>
    %140 = vector.extract_strided_slice %135 {offsets = [4, 0], sizes = [16, 32], strides = [1, 1]} : vector<20x32xf32> to vector<16x32xf32>
    %141 = tpu.concatenate %136, %137, %138, %139, %140 in 1 : vector<16x32xf32>, vector<16x32xf32>, vector<16x32xf32>, vector<16x32xf32>, vector<16x32xf32> -> vector<16x160xf32>
    %c3 = arith.constant 3 : index
    %c0_62 = arith.constant 0 : index
    %c0_63 = arith.constant 0 : index
    %142 = vector.load %arg4[%c3, %c0_62, %c0_63] : memref<5x160x32xf32, #tpu.memory_space<vmem>>, vector<1x160x32xf32>
    %143 = vector.shape_cast %142 : vector<1x160x32xf32> to vector<160x32xf32>
    %cst_64 = arith.constant dense<0.000000e+00> : vector<16x32xf32>
    %144 = tpu.matmul %141, %143, %cst_64 {dimension_numbers = #tpu.dot_dimension_numbers<[1], [0], [0], [1], [0, 0, 1, 1], [], []>} : vector<16x160xf32>, vector<160x32xf32>, vector<16x32xf32> -> vector<16x32xf32>
    %c3_65 = arith.constant 3 : index
    %c0_66 = arith.constant 0 : index
    %c0_67 = arith.constant 0 : index
    %145 = vector.load %arg5[%c3_65, %c0_66, %c0_67] : memref<5x1x32xf32, #tpu.memory_space<vmem>>, vector<1x1x32xf32>
    %146 = vector.shape_cast %145 : vector<1x1x32xf32> to vector<1x32xf32>
    %147 = vector.broadcast %146 : vector<1x32xf32> to vector<16x32xf32>
    %148 = arith.addf %144, %147 : vector<16x32xf32>
    %cst_68 = arith.constant 0.000000e+00 : f32
    %149 = vector.broadcast %cst_68 : f32 to vector<16x32xf32>
    %150 = arith.maximumf %148, %149 : vector<16x32xf32>
    %cst_69 = arith.constant dense<0.000000e+00> : vector<16xf32>
    %151 = vector.multi_reduction <add>, %150, %cst_69 [1] : vector<16x32xf32> to vector<16xf32>
    %152 = vector.shape_cast %151 : vector<16xf32> to vector<16x1xf32>
    %cst_70 = arith.constant 3.200000e+01 : f32
    %153 = vector.broadcast %cst_70 : f32 to vector<16x1xf32>
    %154 = arith.divf %152, %153 : vector<16x1xf32>
    %155 = vector.broadcast %154 : vector<16x1xf32> to vector<16x32xf32>
    %156 = arith.subf %150, %155 : vector<16x32xf32>
    %157 = arith.mulf %156, %156 : vector<16x32xf32>
    %cst_71 = arith.constant dense<0.000000e+00> : vector<16xf32>
    %158 = vector.multi_reduction <add>, %157, %cst_71 [1] : vector<16x32xf32> to vector<16xf32>
    %159 = vector.shape_cast %158 : vector<16xf32> to vector<16x1xf32>
    %cst_72 = arith.constant 3.200000e+01 : f32
    %160 = vector.broadcast %cst_72 : f32 to vector<16x1xf32>
    %161 = arith.divf %159, %160 : vector<16x1xf32>
    %162 = vector.broadcast %154 : vector<16x1xf32> to vector<16x32xf32>
    %163 = arith.subf %150, %162 : vector<16x32xf32>
    %cst_73 = arith.constant 9.99999996E-13 : f32
    %164 = vector.broadcast %cst_73 : f32 to vector<16x1xf32>
    %165 = arith.addf %161, %164 : vector<16x1xf32>
    %166 = math.rsqrt %165 : vector<16x1xf32>
    %167 = vector.broadcast %166 : vector<16x1xf32> to vector<16x32xf32>
    %168 = arith.mulf %163, %167 : vector<16x32xf32>
    %c3_74 = arith.constant 3 : index
    %c0_75 = arith.constant 0 : index
    %c0_76 = arith.constant 0 : index
    %169 = vector.load %arg6[%c3_74, %c0_75, %c0_76] : memref<5x1x32xf32, #tpu.memory_space<vmem>>, vector<1x1x32xf32>
    %170 = vector.shape_cast %169 : vector<1x1x32xf32> to vector<1x32xf32>
    %171 = vector.broadcast %170 : vector<1x32xf32> to vector<16x32xf32>
    %172 = arith.mulf %168, %171 : vector<16x32xf32>
    %c3_77 = arith.constant 3 : index
    %c0_78 = arith.constant 0 : index
    %c0_79 = arith.constant 0 : index
    %173 = vector.load %arg7[%c3_77, %c0_78, %c0_79] : memref<5x1x32xf32, #tpu.memory_space<vmem>>, vector<1x1x32xf32>
    %174 = vector.shape_cast %173 : vector<1x1x32xf32> to vector<1x32xf32>
    %175 = vector.broadcast %174 : vector<1x32xf32> to vector<16x32xf32>
    %176 = arith.addf %172, %175 : vector<16x32xf32>
    %177 = tpu.concatenate %8, %176, %8 in 0 : vector<2x32xf32>, vector<16x32xf32>, vector<2x32xf32> -> vector<20x32xf32>
    %178 = vector.extract_strided_slice %177 {offsets = [0, 0], sizes = [16, 32], strides = [1, 1]} : vector<20x32xf32> to vector<16x32xf32>
    %179 = vector.extract_strided_slice %177 {offsets = [1, 0], sizes = [16, 32], strides = [1, 1]} : vector<20x32xf32> to vector<16x32xf32>
    %180 = vector.extract_strided_slice %177 {offsets = [2, 0], sizes = [16, 32], strides = [1, 1]} : vector<20x32xf32> to vector<16x32xf32>
    %181 = vector.extract_strided_slice %177 {offsets = [3, 0], sizes = [16, 32], strides = [1, 1]} : vector<20x32xf32> to vector<16x32xf32>
    %182 = vector.extract_strided_slice %177 {offsets = [4, 0], sizes = [16, 32], strides = [1, 1]} : vector<20x32xf32> to vector<16x32xf32>
    %183 = tpu.concatenate %178, %179, %180, %181, %182 in 1 : vector<16x32xf32>, vector<16x32xf32>, vector<16x32xf32>, vector<16x32xf32>, vector<16x32xf32> -> vector<16x160xf32>
    %c4 = arith.constant 4 : index
    %c0_80 = arith.constant 0 : index
    %c0_81 = arith.constant 0 : index
    %184 = vector.load %arg4[%c4, %c0_80, %c0_81] : memref<5x160x32xf32, #tpu.memory_space<vmem>>, vector<1x160x32xf32>
    %185 = vector.shape_cast %184 : vector<1x160x32xf32> to vector<160x32xf32>
    %cst_82 = arith.constant dense<0.000000e+00> : vector<16x32xf32>
    %186 = tpu.matmul %183, %185, %cst_82 {dimension_numbers = #tpu.dot_dimension_numbers<[1], [0], [0], [1], [0, 0, 1, 1], [], []>} : vector<16x160xf32>, vector<160x32xf32>, vector<16x32xf32> -> vector<16x32xf32>
    %c4_83 = arith.constant 4 : index
    %c0_84 = arith.constant 0 : index
    %c0_85 = arith.constant 0 : index
    %187 = vector.load %arg5[%c4_83, %c0_84, %c0_85] : memref<5x1x32xf32, #tpu.memory_space<vmem>>, vector<1x1x32xf32>
    %188 = vector.shape_cast %187 : vector<1x1x32xf32> to vector<1x32xf32>
    %189 = vector.broadcast %188 : vector<1x32xf32> to vector<16x32xf32>
    %190 = arith.addf %186, %189 : vector<16x32xf32>
    %cst_86 = arith.constant 0.000000e+00 : f32
    %191 = vector.broadcast %cst_86 : f32 to vector<16x32xf32>
    %192 = arith.maximumf %190, %191 : vector<16x32xf32>
    %cst_87 = arith.constant dense<0.000000e+00> : vector<16xf32>
    %193 = vector.multi_reduction <add>, %192, %cst_87 [1] : vector<16x32xf32> to vector<16xf32>
    %194 = vector.shape_cast %193 : vector<16xf32> to vector<16x1xf32>
    %cst_88 = arith.constant 3.200000e+01 : f32
    %195 = vector.broadcast %cst_88 : f32 to vector<16x1xf32>
    %196 = arith.divf %194, %195 : vector<16x1xf32>
    %197 = vector.broadcast %196 : vector<16x1xf32> to vector<16x32xf32>
    %198 = arith.subf %192, %197 : vector<16x32xf32>
    %199 = arith.mulf %198, %198 : vector<16x32xf32>
    %cst_89 = arith.constant dense<0.000000e+00> : vector<16xf32>
    %200 = vector.multi_reduction <add>, %199, %cst_89 [1] : vector<16x32xf32> to vector<16xf32>
    %201 = vector.shape_cast %200 : vector<16xf32> to vector<16x1xf32>
    %cst_90 = arith.constant 3.200000e+01 : f32
    %202 = vector.broadcast %cst_90 : f32 to vector<16x1xf32>
    %203 = arith.divf %201, %202 : vector<16x1xf32>
    %204 = vector.broadcast %196 : vector<16x1xf32> to vector<16x32xf32>
    %205 = arith.subf %192, %204 : vector<16x32xf32>
    %cst_91 = arith.constant 9.99999996E-13 : f32
    %206 = vector.broadcast %cst_91 : f32 to vector<16x1xf32>
    %207 = arith.addf %203, %206 : vector<16x1xf32>
    %208 = math.rsqrt %207 : vector<16x1xf32>
    %209 = vector.broadcast %208 : vector<16x1xf32> to vector<16x32xf32>
    %210 = arith.mulf %205, %209 : vector<16x32xf32>
    %c4_92 = arith.constant 4 : index
    %c0_93 = arith.constant 0 : index
    %c0_94 = arith.constant 0 : index
    %211 = vector.load %arg6[%c4_92, %c0_93, %c0_94] : memref<5x1x32xf32, #tpu.memory_space<vmem>>, vector<1x1x32xf32>
    %212 = vector.shape_cast %211 : vector<1x1x32xf32> to vector<1x32xf32>
    %213 = vector.broadcast %212 : vector<1x32xf32> to vector<16x32xf32>
    %214 = arith.mulf %210, %213 : vector<16x32xf32>
    %c4_95 = arith.constant 4 : index
    %c0_96 = arith.constant 0 : index
    %c0_97 = arith.constant 0 : index
    %215 = vector.load %arg7[%c4_95, %c0_96, %c0_97] : memref<5x1x32xf32, #tpu.memory_space<vmem>>, vector<1x1x32xf32>
    %216 = vector.shape_cast %215 : vector<1x1x32xf32> to vector<1x32xf32>
    %217 = vector.broadcast %216 : vector<1x32xf32> to vector<16x32xf32>
    %218 = arith.addf %214, %217 : vector<16x32xf32>
    %c0_98 = arith.constant 0 : index
    %c0_99 = arith.constant 0 : index
    %219 = vector.load %arg8[%c0_98, %c0_99] : memref<32x128xf32, #tpu.memory_space<vmem>>, vector<32x128xf32>
    %cst_100 = arith.constant dense<0.000000e+00> : vector<16x128xf32>
    %220 = tpu.matmul %218, %219, %cst_100 {dimension_numbers = #tpu.dot_dimension_numbers<[1], [0], [0], [1], [0, 0, 1, 1], [], []>} : vector<16x32xf32>, vector<32x128xf32>, vector<16x128xf32> -> vector<16x128xf32>
    %c0_101 = arith.constant 0 : index
    %c0_102 = arith.constant 0 : index
    %221 = vector.load %arg9[%c0_101, %c0_102] : memref<1x128xf32, #tpu.memory_space<vmem>>, vector<1x128xf32>
    %222 = vector.broadcast %221 : vector<1x128xf32> to vector<16x128xf32>
    %223 = arith.addf %220, %222 : vector<16x128xf32>
    %c0_103 = arith.constant 0 : index
    %c0_104 = arith.constant 0 : index
    %c0_105 = arith.constant 0 : index
    %224 = vector.load %arg10[%c0_103, %c0_104, %c0_105] : memref<1x16x128xf32, #tpu.memory_space<vmem>>, vector<1x16x128xf32>
    %225 = vector.shape_cast %224 : vector<1x16x128xf32> to vector<16x128xf32>
    %226 = vector.shape_cast %223 : vector<16x128xf32> to vector<1x16x128xf32>
    tpu.vector_store %arg10[%c0_103, %c0_104, %c0_105], %226 {strides = array<i32>} : memref<1x16x128xf32, #tpu.memory_space<vmem>>, vector<1x16x128xf32>,
    return
  }
  func.func @transform_0(%arg0: i32) -> (i32, i32, i32) {
    %c0_i32 = arith.constant 0 : i32
    %c0_i32_0 = arith.constant 0 : i32
    %c0_i32_1 = arith.constant 0 : i32
    return %arg0, %c0_i32, %c0_i32_0 : i32, i32, i32
  }
  func.func @transform_1(%arg0: i32) -> (i32, i32, i32) {
    %c0_i32 = arith.constant 0 : i32
    %c0_i32_0 = arith.constant 0 : i32
    %c0_i32_1 = arith.constant 0 : i32
    return %arg0, %c0_i32, %c0_i32_0 : i32, i32, i32
  }
  func.func @transform_2(%arg0: i32) -> (i32, i32) {
    %c0_i32 = arith.constant 0 : i32
    %c0_i32_0 = arith.constant 0 : i32
    %c0_i32_1 = arith.constant 0 : i32
    return %c0_i32, %c0_i32_0 : i32, i32
  }
  func.func @transform_3(%arg0: i32) -> (i32, i32, i32) {
    %c0_i32 = arith.constant 0 : i32
    %c0_i32_0 = arith.constant 0 : i32
    %c0_i32_1 = arith.constant 0 : i32
    %c0_i32_2 = arith.constant 0 : i32
    return %c0_i32, %c0_i32_0, %c0_i32_1 : i32, i32, i32
  }
  func.func @transform_4(%arg0: i32) -> (i32, i32, i32) {
    %c0_i32 = arith.constant 0 : i32
    %c0_i32_0 = arith.constant 0 : i32
    %c0_i32_1 = arith.constant 0 : i32
    %c0_i32_2 = arith.constant 0 : i32
    return %c0_i32, %c0_i32_0, %c0_i32_1 : i32, i32, i32
  }
  func.func @transform_5(%arg0: i32) -> (i32, i32, i32) {
    %c0_i32 = arith.constant 0 : i32
    %c0_i32_0 = arith.constant 0 : i32
    %c0_i32_1 = arith.constant 0 : i32
    %c0_i32_2 = arith.constant 0 : i32
    return %c0_i32, %c0_i32_0, %c0_i32_1 : i32, i32, i32
  }
  func.func @transform_6(%arg0: i32) -> (i32, i32, i32) {
    %c0_i32 = arith.constant 0 : i32
    %c0_i32_0 = arith.constant 0 : i32
    %c0_i32_1 = arith.constant 0 : i32
    %c0_i32_2 = arith.constant 0 : i32
    return %c0_i32, %c0_i32_0, %c0_i32_1 : i32, i32, i32
  }
  func.func @transform_7(%arg0: i32) -> (i32, i32) {
    %c0_i32 = arith.constant 0 : i32
    %c0_i32_0 = arith.constant 0 : i32
    %c0_i32_1 = arith.constant 0 : i32
    return %c0_i32, %c0_i32_0 : i32, i32
  }
  func.func @transform_8(%arg0: i32) -> (i32, i32) {
    %c0_i32 = arith.constant 0 : i32
    %c0_i32_0 = arith.constant 0 : i32
    %c0_i32_1 = arith.constant 0 : i32
    return %c0_i32, %c0_i32_0 : i32, i32
  }
  func.func @transform_9(%arg0: i32) -> (i32, i32, i32) {
    %c0_i32 = arith.constant 0 : i32
    %c0_i32_0 = arith.constant 0 : i32
    %c0_i32_1 = arith.constant 0 : i32
    return %arg0, %c0_i32, %c0_i32_0 : i32, i32, i32
  }
}

</mosaic_0001>

<llo_original>
// kernel: tpu_custom_call.1
$region0: #{tpu_custom_call.1}
  #allocation0 [shape = 'u32[]', space=smem, size = 0x4, offset = 0x4, fixed_abs, tag = 'smem constant byte address 0x4 - core index']
  #allocation1 [shape = 'u32[144,128]{1,0:T(1,128)}', space=vmem, size = 0x12000, scoped, tag = 'internal scratch']
  #allocation2 [shape = 'f32[1,1]{1,0:T(1,128)S(6)}', space=smem, size = 0x200, scoped, tag = 'scoped memory for tpu_custom_call.1']
  %s0 = inlined_call_operand.vmem [shape: f32[2,16,32], index: 0, kind: input, shape index: {}]
  %s1 = inlined_call_operand.vmem [shape: f32[2,16,32], index: 1, kind: input, shape index: {}]
  %s2 = inlined_call_operand.<no memory space> [shape: f32[1,1], index: 2, kind: input, shape index: {}]
  %s3 = inlined_call_operand.vmem [shape: f32[5,160,32], index: 3, kind: input, shape index: {}]
  %s4 = inlined_call_operand.vmem [shape: f32[5,1,32], index: 4, kind: input, shape index: {}]
  %s5 = inlined_call_operand.vmem [shape: f32[5,1,32], index: 5, kind: input, shape index: {}]
  %s6 = inlined_call_operand.vmem [shape: f32[5,1,32], index: 6, kind: input, shape index: {}]
  %s7 = inlined_call_operand.vmem [shape: f32[32,128], index: 7, kind: input, shape index: {}]
  %s8 = inlined_call_operand.vmem [shape: f32[1,128], index: 8, kind: input, shape index: {}]
  %s9 = inlined_call_operand.hbm [shape: f32[2,16,128], index: 9, kind: output, shape index: {}]
  %s10 = sld [smem:[#allocation0]]
  $region69: #{tpu_custom_call.1} parent=0
    _
  %s12 = ssub.s32 1, %s10
  %s13 = scalar_select 0, %s12, %s10
  %14 = sst [smem:[#allocation2]] %s2
  $region1: #{tpu_custom_call.1} parent=0
    #allocation3 [shape = 'u8[16384]{0}', space=vmem, size = 0x4000, scoped, tag = 'output window, operand 0']
    #allocation4 [shape = 's32[2]{0}', space=sflag, size = 0x8, scoped, tag = 'scoped memory for tpu_custom_call.1']
    %15 = vsyncpa [#allocation4], 0
    %s16 = scalar_lea.sflag [#allocation4], 1
    %17 = vsyncpa %s16, 0
    loop: start=0, step=1, limit=4
    $region2: #{tpu_custom_call.1} parent=1 // loop_pre_header
      _
    $region3: #{tpu_custom_call.1} parent=1 // loop_header
      %s19 = sphi 0, %s23
      %p20 = scmp.ge.s32.totalorder %s19, 4
      %s29 = sphi 0, %s31
      %s32 = sphi 0, %s29
      %s33 = sphi 0, %s32
      %s49 = sphi 0, %s33
      %s55 = sphi 0, %s57
      %s58 = sphi 0, %s55
      %s59 = sphi 0, %s58
      %s75 = sphi 0, %s59
      %s79 = sphi 0, %s79
      %s81 = sphi 0, %s79
      %s82 = sphi 0, %s81
      %s96 = sphi 0, %s82
      %s100 = sphi 0, %s100
      %s102 = sphi 0, %s100
      %s103 = sphi 0, %s102
      %s117 = sphi 0, %s103
      %s121 = sphi 0, %s121
      %s123 = sphi 0, %s121
      %s124 = sphi 0, %s123
      %s138 = sphi 0, %s124
      %s142 = sphi 0, %s142
      %s144 = sphi 0, %s142
      %s145 = sphi 0, %s144
      %s159 = sphi 0, %s145
      %s163 = sphi 0, %s163
      %s165 = sphi 0, %s163
      %s166 = sphi 0, %s165
      %s180 = sphi 0, %s166
      %s184 = sphi 0, %s184
      %s186 = sphi 0, %s184
      %s187 = sphi 0, %s186
      %s201 = sphi 0, %s187
      %s205 = sphi 0, %s205
      %s207 = sphi 0, %s205
      %s208 = sphi 0, %s207
      %s222 = sphi 0, %s208
      %s228 = sphi 0, %s230
      %s231 = sphi 0, %s228
      %s232 = sphi 0, %s231
      %s248 = sphi 0, %s232
    $region4: #{tpu_custom_call.1} parent=1 // loop_header_branch
      %22 = sbr.rel (%p20) target = $region8
    $region5: #{tpu_custom_call.1} parent=1 // loop_body
      %s24 = ssub.s32 %s19, 1
      %s25 = ssub.s32 %s19, 2
      %s26 = sadd.s32 %s19, 1
      %s27 = ssub.s32 %s19, %s26
      %p28 = scmp.eq.s32.totalorder %s27, 0
      %s30 = sadd.s32 %s29, 1
      %s31 = scalar_select %p28, %s29, %s30
      %p34 = pneg %p28
      %p35 = scmp.eq.s32.totalorder %s19, 1
      %p36 = por %p34, %p35
      %p37 = scmp.ne.s32.totalorder %s29, %s32
      %p38 = scmp.eq.s32.totalorder %s19, 0
      %p39 = por %p37, %p38
      %p40 = scmp.ne.s32.totalorder %s29, %s32
      %p41 = scmp.eq.s32.totalorder %s24, 1
      %p42 = por %p40, %p41
      %p43 = scmp.ne.s32.totalorder %s32, %s33
      %p44 = scmp.eq.s32.totalorder %s24, 0
      %p45 = por %p43, %p44
      %p46 = scmp.ne.s32.totalorder %s32, %s33
      %p47 = scmp.eq.s32.totalorder %s25, 1
      %p48 = por %p46, %p47
      %p50 = scmp.ne.s32.totalorder %s33, %s49
      %p51 = scmp.eq.s32.totalorder %s25, 0
      %p52 = por %p50, %p51
      %s53 = ssub.s32 %s19, %s26
      %p54 = scmp.eq.s32.totalorder %s53, 0
      %s56 = sadd.s32 %s55, 1
      %s57 = scalar_select %p54, %s55, %s56
      %p60 = pneg %p54
      %p61 = scmp.eq.s32.totalorder %s19, 1
      %p62 = por %p60, %p61
      %p63 = scmp.ne.s32.totalorder %s55, %s58
      %p64 = scmp.eq.s32.totalorder %s19, 0
      %p65 = por %p63, %p64
      %p66 = scmp.ne.s32.totalorder %s55, %s58
      %p67 = scmp.eq.s32.totalorder %s24, 1
      %p68 = por %p66, %p67
      %p69 = scmp.ne.s32.totalorder %s58, %s59
      %p70 = scmp.eq.s32.totalorder %s24, 0
      %p71 = por %p69, %p70
      %p72 = scmp.ne.s32.totalorder %s58, %s59
      %p73 = scmp.eq.s32.totalorder %s25, 1
      %p74 = por %p72, %p73
      %p76 = scmp.ne.s32.totalorder %s59, %s75
      %p77 = scmp.eq.s32.totalorder %s25, 0
      %p78 = por %p76, %p77
      %s80 = sadd.s32 %s79, 1
      %p83 = scmp.eq.s32.totalorder %s19, 1
      %p84 = scmp.ne.s32.totalorder %s79, %s81
      %p85 = scmp.eq.s32.totalorder %s19, 0
      %p86 = por %p84, %p85
      %p87 = scmp.ne.s32.totalorder %s79, %s81
      %p88 = scmp.eq.s32.totalorder %s24, 1
      %p89 = por %p87, %p88
      %p90 = scmp.ne.s32.totalorder %s81, %s82
      %p91 = scmp.eq.s32.totalorder %s24, 0
      %p92 = por %p90, %p91
      %p93 = scmp.ne.s32.totalorder %s81, %s82
      %p94 = scmp.eq.s32.totalorder %s25, 1
      %p95 = por %p93, %p94
      %p97 = scmp.ne.s32.totalorder %s82, %s96
      %p98 = scmp.eq.s32.totalorder %s25, 0
      %p99 = por %p97, %p98
      %s101 = sadd.s32 %s100, 1
      %p104 = scmp.eq.s32.totalorder %s19, 1
      %p105 = scmp.ne.s32.totalorder %s100, %s102
      %p106 = scmp.eq.s32.totalorder %s19, 0
      %p107 = por %p105, %p106
      %p108 = scmp.ne.s32.totalorder %s100, %s102
      %p109 = scmp.eq.s32.totalorder %s24, 1
      %p110 = por %p108, %p109
      %p111 = scmp.ne.s32.totalorder %s102, %s103
      %p112 = scmp.eq.s32.totalorder %s24, 0
      %p113 = por %p111, %p112
      %p114 = scmp.ne.s32.totalorder %s102, %s103
      %p115 = scmp.eq.s32.totalorder %s25, 1
      %p116 = por %p114, %p115
      %p118 = scmp.ne.s32.totalorder %s103, %s117
      %p119 = scmp.eq.s32.totalorder %s25, 0
      %p120 = por %p118, %p119
      %s122 = sadd.s32 %s121, 1
      %p125 = scmp.eq.s32.totalorder %s19, 1
      %p126 = scmp.ne.s32.totalorder %s121, %s123
      %p127 = scmp.eq.s32.totalorder %s19, 0
      %p128 = por %p126, %p127
      %p129 = scmp.ne.s32.totalorder %s121, %s123
      %p130 = scmp.eq.s32.totalorder %s24, 1
      %p131 = por %p129, %p130
      %p132 = scmp.ne.s32.totalorder %s123, %s124
      %p133 = scmp.eq.s32.totalorder %s24, 0
      %p134 = por %p132, %p133
      %p135 = scmp.ne.s32.totalorder %s123, %s124
      %p136 = scmp.eq.s32.totalorder %s25, 1
      %p137 = por %p135, %p136
      %p139 = scmp.ne.s32.totalorder %s124, %s138
      %p140 = scmp.eq.s32.totalorder %s25, 0
      %p141 = por %p139, %p140
      %s143 = sadd.s32 %s142, 1
      %p146 = scmp.eq.s32.totalorder %s19, 1
      %p147 = scmp.ne.s32.totalorder %s142, %s144
      %p148 = scmp.eq.s32.totalorder %s19, 0
      %p149 = por %p147, %p148
      %p150 = scmp.ne.s32.totalorder %s142, %s144
      %p151 = scmp.eq.s32.totalorder %s24, 1
      %p152 = por %p150, %p151
      %p153 = scmp.ne.s32.totalorder %s144, %s145
      %p154 = scmp.eq.s32.totalorder %s24, 0
      %p155 = por %p153, %p154
      %p156 = scmp.ne.s32.totalorder %s144, %s145
      %p157 = scmp.eq.s32.totalorder %s25, 1
      %p158 = por %p156, %p157
      %p160 = scmp.ne.s32.totalorder %s145, %s159
      %p161 = scmp.eq.s32.totalorder %s25, 0
      %p162 = por %p160, %p161
      %s164 = sadd.s32 %s163, 1
      %p167 = scmp.eq.s32.totalorder %s19, 1
      %p168 = scmp.ne.s32.totalorder %s163, %s165
      %p169 = scmp.eq.s32.totalorder %s19, 0
      %p170 = por %p168, %p169
      %p171 = scmp.ne.s32.totalorder %s163, %s165
      %p172 = scmp.eq.s32.totalorder %s24, 1
      %p173 = por %p171, %p172
      %p174 = scmp.ne.s32.totalorder %s165, %s166
      %p175 = scmp.eq.s32.totalorder %s24, 0
      %p176 = por %p174, %p175
      %p177 = scmp.ne.s32.totalorder %s165, %s166
      %p178 = scmp.eq.s32.totalorder %s25, 1
      %p179 = por %p177, %p178
      %p181 = scmp.ne.s32.totalorder %s166, %s180
      %p182 = scmp.eq.s32.totalorder %s25, 0
      %p183 = por %p181, %p182
      %s185 = sadd.s32 %s184, 1
      %p188 = scmp.eq.s32.totalorder %s19, 1
      %p189 = scmp.ne.s32.totalorder %s184, %s186
      %p190 = scmp.eq.s32.totalorder %s19, 0
      %p191 = por %p189, %p190
      %p192 = scmp.ne.s32.totalorder %s184, %s186
      %p193 = scmp.eq.s32.totalorder %s24, 1
      %p194 = por %p192, %p193
      %p195 = scmp.ne.s32.totalorder %s186, %s187
      %p196 = scmp.eq.s32.totalorder %s24, 0
      %p197 = por %p195, %p196
      %p198 = scmp.ne.s32.totalorder %s186, %s187
      %p199 = scmp.eq.s32.totalorder %s25, 1
      %p200 = por %p198, %p199
      %p202 = scmp.ne.s32.totalorder %s187, %s201
      %p203 = scmp.eq.s32.totalorder %s25, 0
      %p204 = por %p202, %p203
      %s206 = sadd.s32 %s205, 1
      %p209 = scmp.eq.s32.totalorder %s19, 1
      %p210 = scmp.ne.s32.totalorder %s205, %s207
      %p211 = scmp.eq.s32.totalorder %s19, 0
      %p212 = por %p210, %p211
      %p213 = scmp.ne.s32.totalorder %s205, %s207
      %p214 = scmp.eq.s32.totalorder %s24, 1
      %p215 = por %p213, %p214
      %p216 = scmp.ne.s32.totalorder %s207, %s208
      %p217 = scmp.eq.s32.totalorder %s24, 0
      %p218 = por %p216, %p217
      %p219 = scmp.ne.s32.totalorder %s207, %s208
      %p220 = scmp.eq.s32.totalorder %s25, 1
      %p221 = por %p219, %p220
      %p223 = scmp.ne.s32.totalorder %s208, %s222
      %p224 = scmp.eq.s32.totalorder %s25, 0
      %p225 = por %p223, %p224
      %s226 = ssub.s32 %s19, %s26
      %p227 = scmp.eq.s32.totalorder %s226, 0
      %s229 = sadd.s32 %s228, 1
      %s230 = scalar_select %p227, %s228, %s229
      %p233 = pneg %p227
      %p234 = scmp.eq.s32.totalorder %s19, 1
      %p235 = por %p233, %p234
      %p236 = scmp.ne.s32.totalorder %s228, %s231
      %p237 = scmp.eq.s32.totalorder %s19, 0
      %p238 = por %p236, %p237
      %p239 = scmp.ne.s32.totalorder %s228, %s231
      %p240 = scmp.eq.s32.totalorder %s24, 1
      %p241 = por %p239, %p240
      %p242 = scmp.ne.s32.totalorder %s231, %s232
      %p243 = scmp.eq.s32.totalorder %s24, 0
      %p244 = por %p242, %p243
      %p245 = scmp.ne.s32.totalorder %s231, %s232
      %p246 = scmp.eq.s32.totalorder %s25, 1
      %p247 = por %p245, %p246
      %p249 = scmp.ne.s32.totalorder %s232, %s248
      %p250 = scmp.eq.s32.totalorder %s25, 0
      %p251 = por %p249, %p250
      %p252 = scmp.le.s32.totalorder 1, %s19
      %p253 = scmp.lt.s32.totalorder %s19, 3
      %p254 = pnand %p252, %p253
      %p255 = pneg %p254
      // Predicated region
      $region9: #{tpu_custom_call.1} parent=5 // pred_check
        _
      $region10: #{tpu_custom_call.1} parent=5 // pred_check_branch
        %257 = sbr.rel (%p254) target = $region12
      $region11: #{tpu_custom_call.1} parent=5 // pred_region
        %s258 = ssub.s32 %s19, 1
        // Predicated region
        $region13: #{tpu_custom_call.1} parent=11 // pred_check
          %p259 = pneg %p92
        $region14: #{tpu_custom_call.1} parent=11 // pred_check_branch
          %261 = sbr.rel (%p259) target = $region16
        $region15: #{tpu_custom_call.1} parent=11 // pred_region
          _
        $region16: #{tpu_custom_call.1} parent=11 // pred_fallthru
          _
        // Predicated region
        $region17: #{tpu_custom_call.1} parent=11 // pred_check
          %p262 = pneg %p113
        $region18: #{tpu_custom_call.1} parent=11 // pred_check_branch
          %264 = sbr.rel (%p262) target = $region20
        $region19: #{tpu_custom_call.1} parent=11 // pred_region
          _
        $region20: #{tpu_custom_call.1} parent=11 // pred_fallthru
          _
        // Predicated region
        $region21: #{tpu_custom_call.1} parent=11 // pred_check
          %p265 = pneg %p134
        $region22: #{tpu_custom_call.1} parent=11 // pred_check_branch
          %267 = sbr.rel (%p265) target = $region24
        $region23: #{tpu_custom_call.1} parent=11 // pred_region
          _
        $region24: #{tpu_custom_call.1} parent=11 // pred_fallthru
          _
        // Predicated region
        $region25: #{tpu_custom_call.1} parent=11 // pred_check
          %p268 = pneg %p155
        $region26: #{tpu_custom_call.1} parent=11 // pred_check_branch
          %270 = sbr.rel (%p268) target = $region28
        $region27: #{tpu_custom_call.1} parent=11 // pred_region
          _
        $region28: #{tpu_custom_call.1} parent=11 // pred_fallthru
          _
        // Predicated region
        $region29: #{tpu_custom_call.1} parent=11 // pred_check
          %p271 = pneg %p176
        $region30: #{tpu_custom_call.1} parent=11 // pred_check_branch
          %273 = sbr.rel (%p271) target = $region32
        $region31: #{tpu_custom_call.1} parent=11 // pred_region
          _
        $region32: #{tpu_custom_call.1} parent=11 // pred_fallthru
          _
        // Predicated region
        $region33: #{tpu_custom_call.1} parent=11 // pred_check
          %p274 = pneg %p197
        $region34: #{tpu_custom_call.1} parent=11 // pred_check_branch
          %276 = sbr.rel (%p274) target = $region36
        $region35: #{tpu_custom_call.1} parent=11 // pred_region
          _
        $region36: #{tpu_custom_call.1} parent=11 // pred_fallthru
          _
        // Predicated region
        $region37: #{tpu_custom_call.1} parent=11 // pred_check
          %p277 = pneg %p218
        $region38: #{tpu_custom_call.1} parent=11 // pred_check_branch
          %279 = sbr.rel (%p277) target = $region40
        $region39: #{tpu_custom_call.1} parent=11 // pred_region
          _
        $region40: #{tpu_custom_call.1} parent=11 // pred_fallthru
          _
      $region12: #{tpu_custom_call.1} parent=5 // pred_fallthru
        _
      %p280 = scmp.lt.s32.totalorder %s19, 2
      // Predicated region
      $region41: #{tpu_custom_call.1} parent=5 // pred_check
        %p281 = pneg %p280
      $region42: #{tpu_custom_call.1} parent=5 // pred_check_branch
        %283 = sbr.rel (%p281) target = $region44
      $region43: #{tpu_custom_call.1} parent=5 // pred_region
        // Predicated region
        $region45: #{tpu_custom_call.1} parent=43 // pred_check
          %p284 = pneg %p39
        $region46: #{tpu_custom_call.1} parent=43 // pred_check_branch
          %286 = sbr.rel (%p284) target = $region48
        $region47: #{tpu_custom_call.1} parent=43 // pred_region
          %p287 = scmp.lt.s32.totalorder %s19, 1
          %s288 = scalar_select %p287, %s19, 1
          %s289 = smul.addr %s288, 2
          %s290 = smul.addr %s289, 8
          %s291 = scalar_lea.vmem %s0, %s290
        $region48: #{tpu_custom_call.1} parent=43 // pred_fallthru
          _
        // Predicated region
        $region49: #{tpu_custom_call.1} parent=43 // pred_check
          %p292 = pneg %p65
        $region50: #{tpu_custom_call.1} parent=43 // pred_check_branch
          %294 = sbr.rel (%p292) target = $region52
        $region51: #{tpu_custom_call.1} parent=43 // pred_region
          %p295 = scmp.lt.s32.totalorder %s19, 1
          %s296 = scalar_select %p295, %s19, 1
          %s297 = smul.addr %s296, 2
          %s298 = smul.addr %s297, 8
          %s299 = scalar_lea.vmem %s1, %s298
        $region52: #{tpu_custom_call.1} parent=43 // pred_fallthru
          _
      $region44: #{tpu_custom_call.1} parent=5 // pred_fallthru
        _
      %p300 = scmp.le.s32.totalorder 1, %s19
      %p301 = scmp.lt.s32.totalorder %s19, 3
      %p302 = pnand %p300, %p301
      %p303 = pneg %p302
      // Predicated region
      $region53: #{tpu_custom_call.1} parent=5 // pred_check
        _
      $region54: #{tpu_custom_call.1} parent=5 // pred_check_branch
        %305 = sbr.rel (%p302) target = $region56
      $region55: #{tpu_custom_call.1} parent=5 // pred_region
        %s306 = ssub.s32 %s19, 1
        %p307 = scmp.lt.s32.totalorder %s24, 1
        %s308 = scalar_select %p307, %s24, 1
        %s309 = smul.addr %s308, 2
        %s310 = smul.addr %s309, 8
        %s311 = scalar_lea.vmem %s0, %s310
        %p312 = pneg %p45
        %p313 = pneg %p42
        %p314 = scmp.lt.s32.totalorder %s24, 1
        %s315 = scalar_select %p314, %s24, 1
        %s316 = smul.addr %s315, 2
        %s317 = smul.addr %s316, 8
        %s318 = scalar_lea.vmem %s1, %s317
        %p319 = pneg %p71
        %p320 = pneg %p68
        %p321 = pneg %p92
        %p322 = pneg %p89
        %p323 = pneg %p113
        %p324 = pneg %p110
        %p325 = pneg %p134
        %p326 = pneg %p131
        %p327 = pneg %p155
        %p328 = pneg %p152
        %p329 = pneg %p176
        %p330 = pneg %p173
        %p331 = pneg %p197
        %p332 = pneg %p194
        %p333 = pneg %p218
        %p334 = pneg %p215
        %p335 = pneg %p244
        %p336 = pneg %p241
        %s337 = sand.u32 %s231, 1
        %s338 = scalar_lea.sflag [#allocation4], %s337
        %s339 = sand.u32 %s231, 1
        %s340 = smul.addr %s339, 16
        %s341 = scalar_lea.vmem [#allocation3], %s340
        %p342 = scmp.lt.s32.totalorder %s24, 1
        %s343 = scalar_select %p342, %s24, 1
        %s344 = smul.addr %s343, 2
        %s345 = smul.addr %s344, 8
        %s346 = scalar_lea.vmem %s0, %s345
        %p347 = scmp.lt.s32.totalorder %s24, 1
        %s348 = scalar_select %p347, %s24, 1
        %s349 = smul.addr %s348, 2
        %s350 = smul.addr %s349, 8
        %s351 = scalar_lea.vmem %s1, %s350
        %s352 = sld [smem:[#allocation2]]
        %v353 = vld [vmem:[%s346] sm:$0xff]
        %v354 = vld [vmem:[%s346 + $0x8] sm:$0xff]
        %v355 = vld [vmem:[%s351] sm:$0xff]
        %v356 = vld [vmem:[%s351 + $0x8] sm:$0xff]
        %v357 = vstv %s352
        %v358 = vmul.f32 %v357, %v355
        %v359 = vmul.f32 %v357, %v356
        %v360 = vadd.f32 %v353, %v358
        %v361 = vadd.f32 %v354, %v359
        %vm364 = vcmask 1041408
        %v365 = vrot.slane %v360, 6
        %v366 = vrot.slane %v361, 6
        %v367 = vsel %vm364, %v365, %v366
        %v371 = vsel %vm364, 0.0, %v365
        %v372 = vsel %vm364, %v366, 0.0
        %vm375 = vcmask 1046528
        %v376 = vrot.slane %v371, 1
        %v377 = vrot.slane %v367, 1
        %v378 = vsel %vm375, %v376, %v377
        %v379 = vrot.slane %v372, 1
        %v380 = vsel %vm375, %v377, %v379
        %381 = vrot.lane.b32.xlu0 %v378, 32
        %v382 = vpop.permute.xlu0 %381
        %383 = vrot.lane.b32.xlu0 %v380, 32
        %v384 = vpop.permute.xlu0 %383
        %vm387 = vcmask 1045504
        %v388 = vrot.slane %v371, 2
        %v389 = vrot.slane %v367, 2
        %v390 = vsel %vm387, %v388, %v389
        %v391 = vrot.slane %v372, 2
        %v392 = vsel %vm387, %v389, %v391
        %393 = vrot.lane.b32.xlu0 %v390, 64
        %v394 = vpop.permute.xlu0 %393
        %395 = vrot.lane.b32.xlu0 %v392, 64
        %v396 = vpop.permute.xlu0 %395
        %vm399 = vcmask 1044480
        %v400 = vrot.slane %v371, 3
        %v401 = vrot.slane %v367, 3
        %v402 = vsel %vm399, %v400, %v401
        %v403 = vrot.slane %v372, 3
        %v404 = vsel %vm399, %v401, %v403
        %405 = vrot.lane.b32.xlu0 %v402, 96
        %v406 = vpop.permute.xlu0 %405
        %407 = vrot.lane.b32.xlu0 %v404, 96
        %v408 = vpop.permute.xlu0 %407
        %vm411 = vcmask 1043456
        %v412 = vrot.slane %v371, 4
        %v413 = vrot.slane %v367, 4
        %v414 = vsel %vm411, %v412, %v413
        %v415 = vrot.slane %v372, 4
        %v416 = vsel %vm411, %v413, %v415
        %vm417 = vcmask 261120
        %v418 = vsel %vm417, %v371, %v382
        %v419 = vsel %vm417, %v367, %v384
        %vm420 = vcmask 523264
        %v421 = vsel %vm420, %v418, %v394
        %v422 = vsel %vm420, %v419, %v396
        %vm423 = vcmask 785408
        %v424 = vsel %vm423, %v421, %v406
        %v425 = vsel %vm423, %v422, %v408
        %v426 = vld [vmem:[%s3] sm:$0xff]
        %v427 = vld [vmem:[%s3 + $0x8] sm:$0xff]
        %v428 = vld [vmem:[%s3 + $0x10] sm:$0xff]
        %v429 = vld [vmem:[%s3 + $0x18] sm:$0xff]
        %v430 = vld [vmem:[%s3 + $0x20] sm:$0xff]
        %v431 = vld [vmem:[%s3 + $0x28] sm:$0xff]
        %v432 = vld [vmem:[%s3 + $0x30] sm:$0xff]
        %v433 = vld [vmem:[%s3 + $0x38] sm:$0xff]
        %v434 = vld [vmem:[%s3 + $0x40] sm:$0xff]
        %v435 = vld [vmem:[%s3 + $0x48] sm:$0xff]
        %v436 = vld [vmem:[%s3 + $0x50] sm:$0xff]
        %v437 = vld [vmem:[%s3 + $0x58] sm:$0xff]
        %v438 = vld [vmem:[%s3 + $0x60] sm:$0xff]
        %v439 = vld [vmem:[%s3 + $0x68] sm:$0xff]
        %v440 = vld [vmem:[%s3 + $0x70] sm:$0xff]
        %v441 = vld [vmem:[%s3 + $0x78] sm:$0xff]
        %v442 = vld [vmem:[%s3 + $0x80] sm:$0xff]
        %v443 = vld [vmem:[%s3 + $0x88] sm:$0xff]
        %v444 = vld [vmem:[%s3 + $0x90] sm:$0xff]
        %v445 = vld [vmem:[%s3 + $0x98] sm:$0xff]
        %v446 = vld [vmem:[%s4] sm:$0x1]
        %v448 = vlaneseq
        %v449 = vshrl.u32 %v448, 7
        %v450 = vsub.s32 0, %v449
        %v451 = vrot.slane %v446, %v450
        %v453 = vsel %vm417, %v414, 0
        %v455 = vsel %vm417, %v416, 0
        %457 = vmatprep.subr.mxu0 0.0
        %458 = vmatpush1.msra.mxu0 %v441
        %459 = vmatprep.subr.mxu0 0.0
        %460 = vmatpush1.msra.mxu0 %v440
        %461 = vmatprep.subr.mxu0 0.0
        %462 = vmatpush1.msra.mxu0 %v439
        %463 = vmatprep.subr.mxu0 0.0
        %464 = vmatpush1.msra.mxu0 %v438
        %465 = vmatprep.subr.mxu0 0.0
        %466 = vmatpush1.msra.mxu0 %v437
        %467 = vmatprep.subr.mxu0 0.0
        %468 = vmatpush1.msra.mxu0 %v436
        %469 = vmatprep.subr.mxu0 0.0
        %470 = vmatpush1.msra.mxu0 %v435
        %471 = vmatprep.subr.mxu0 0.0
        %472 = vmatpush1.msra.mxu0 %v434
        %473 = vmatprep.subr.mxu0 0.0
        %474 = vmatpush1.msra.mxu0 %v433
        %475 = vmatprep.subr.mxu0 0.0
        %476 = vmatpush1.msra.mxu0 %v432
        %477 = vmatprep.subr.mxu0 0.0
        %478 = vmatpush1.msra.mxu0 %v431
        %479 = vmatprep.subr.mxu0 0.0
        %480 = vmatpush1.msra.mxu0 %v430
        %481 = vmatprep.subr.mxu0 0.0
        %482 = vmatpush1.msra.mxu0 %v429
        %483 = vmatprep.subr.mxu0 0.0
        %484 = vmatpush1.msra.mxu0 %v428
        %485 = vmatprep.subr.mxu0 0.0
        %486 = vmatpush1.msra.mxu0 %v427
        %487 = vmatprep.subr.mxu0 0.0
        %488 = vmatpush1.msra.mxu0 %v426
        %489 = vmatprep.subr.mxu0 0.0
        %490 = vmatpush2.msra.mxu0 0.0
        %491 = vmatprep.subr.mxu0 0.0
        %492 = vmatpush2.msra.mxu0 0.0
        %493 = vmatprep.subr.mxu0 0.0
        %494 = vmatpush2.msra.mxu0 0.0
        %495 = vmatprep.subr.mxu0 0.0
        %496 = vmatpush2.msra.mxu0 0.0
        %497 = vmatprep.subr.mxu0 0.0
        %498 = vmatpush2.msra.mxu0 0.0
        %499 = vmatprep.subr.mxu0 0.0
        %500 = vmatpush2.msra.mxu0 0.0
        %501 = vmatprep.subr.mxu0 0.0
        %502 = vmatpush2.msra.mxu0 0.0
        %503 = vmatprep.subr.mxu0 0.0
        %504 = vmatpush2.msra.mxu0 0.0
        %505 = vmatprep.subr.mxu0 0.0
        %506 = vmatpush2.msra.mxu0 0.0
        %507 = vmatprep.subr.mxu0 0.0
        %508 = vmatpush2.msra.mxu0 0.0
        %509 = vmatprep.subr.mxu0 0.0
        %510 = vmatpush2.msra.mxu0 0.0
        %511 = vmatprep.subr.mxu0 0.0
        %512 = vmatpush2.msra.mxu0 0.0
        %513 = vmatprep.subr.mxu0 0.0
        %514 = vmatpush2.msra.mxu0 %v445
        %515 = vmatprep.subr.mxu0 0.0
        %516 = vmatpush2.msra.mxu0 %v444
        %517 = vmatprep.subr.mxu0 0.0
        %518 = vmatpush2.msra.mxu0 %v443
        %519 = vmatprep.subr.mxu0 0.0
        %520 = vmatpush2.msra.mxu0 %v442
        %521 = vmatprep.mubr.f32.mxu0 %v453
        %522 = vmatmul.mubr.f32.gmra.mxu0 %v424
        %v523 = vpop.f32.mrf.mxu0
        %v524 = vadd.f32 %v451, %v523
        %v525 = vpop.f32.mrf.mxu0
        %526 = vmatprep.mubr.f32.mxu0 %v455
        %527 = vmatmul.mubr.f32.gmra.mxu0 %v425
        %v528 = vpop.f32.mrf.mxu0
        %v529 = vadd.f32 %v451, %v528
        %v530 = vpop.f32.mrf.mxu0
        %531 = vdwg.mxu0
        %v532 = vmax.f32 %v524, 0.0
        %v533 = vmax.f32 %v529, 0.0
        %v534 = vsel %vm417, %v532, 0.0
        %535 = vadd.xlane.f32.xlu0 %v534
        %v536 = vpop.xlane.xlu0 %535
        %v537 = vsel %vm417, %v533, 0.0
        %538 = vadd.xlane.f32.xlu0 %v537
        %v539 = vpop.xlane.xlu0 %538
        %v540 = vrcp.pop 32.0
        %v541 = vmul.f32 %v536, %v540
        %v542 = vmul.f32 %v539, %v540
        %v543 = vsub.f32 %v532, %v541
        %v544 = vsub.f32 %v533, %v542
        %v545 = vmul.f32 %v543, %v543
        %v546 = vmul.f32 %v544, %v544
        %v547 = vsel %vm417, %v545, 0.0
        %548 = vadd.xlane.f32.xlu0 %v547
        %v549 = vpop.xlane.xlu0 %548
        %v550 = vsel %vm417, %v546, 0.0
        %551 = vadd.xlane.f32.xlu0 %v550
        %v552 = vpop.xlane.xlu0 %551
        %v553 = vmul.f32 %v549, %v540
        %v554 = vmul.f32 %v552, %v540
        %v555 = vadd.f32 %v553, 1e-12
        %v556 = vadd.f32 %v554, 1e-12
        %v557 = vrsqrt.pop %v555
        %v558 = vrsqrt.pop %v556
        %v559 = vmul.f32 %v543, %v557
        %v560 = vmul.f32 %v544, %v558
        %v561 = vld [vmem:[%s5] sm:$0x1]
        %v563 = vlaneseq
        %v564 = vshrl.u32 %v563, 7
        %v565 = vsub.s32 0, %v564
        %v566 = vrot.slane %v561, %v565
        %v568 = vmul.f32 %v559, %v566
        %v569 = vmul.f32 %v560, %v566
        %v570 = vld [vmem:[%s6] sm:$0x1]
        %v572 = vlaneseq
        %v573 = vshrl.u32 %v572, 7
        %v574 = vsub.s32 0, %v573
        %v575 = vrot.slane %v570, %v574
        %v577 = vadd.f32 %v568, %v575
        %v578 = vadd.f32 %v569, %v575
        %v581 = vrot.slane %v577, 6
        %v582 = vrot.slane %v578, 6
        %v583 = vsel %vm364, %v581, %v582
        %v587 = vsel %vm364, 0.0, %v581
        %v588 = vsel %vm364, %v582, 0.0
        %v591 = vrot.slane %v587, 1
        %v592 = vrot.slane %v583, 1
        %v593 = vsel %vm375, %v591, %v592
        %v594 = vrot.slane %v588, 1
        %v595 = vsel %vm375, %v592, %v594
        %596 = vrot.lane.b32.xlu0 %v593, 32
        %v597 = vpop.permute.xlu0 %596
        %598 = vrot.lane.b32.xlu0 %v595, 32
        %v599 = vpop.permute.xlu0 %598
        %v602 = vrot.slane %v587, 2
        %v603 = vrot.slane %v583, 2
        %v604 = vsel %vm387, %v602, %v603
        %v605 = vrot.slane %v588, 2
        %v606 = vsel %vm387, %v603, %v605
        %607 = vrot.lane.b32.xlu0 %v604, 64
        %v608 = vpop.permute.xlu0 %607
        %609 = vrot.lane.b32.xlu0 %v606, 64
        %v610 = vpop.permute.xlu0 %609
        %v613 = vrot.slane %v587, 3
        %v614 = vrot.slane %v583, 3
        %v615 = vsel %vm399, %v613, %v614
        %v616 = vrot.slane %v588, 3
        %v617 = vsel %vm399, %v614, %v616
        %618 = vrot.lane.b32.xlu0 %v615, 96
        %v619 = vpop.permute.xlu0 %618
        %620 = vrot.lane.b32.xlu0 %v617, 96
        %v621 = vpop.permute.xlu0 %620
        %v624 = vrot.slane %v587, 4
        %v625 = vrot.slane %v583, 4
        %v626 = vsel %vm411, %v624, %v625
        %v627 = vrot.slane %v588, 4
        %v628 = vsel %vm411, %v625, %v627
        %v629 = vsel %vm417, %v587, %v597
        %v630 = vsel %vm417, %v583, %v599
        %v631 = vsel %vm420, %v629, %v608
        %v632 = vsel %vm420, %v630, %v610
        %v633 = vsel %vm423, %v631, %v619
        %v634 = vsel %vm423, %v632, %v621
        %s635 = scalar_lea.vmem %s3, 160
        %v636 = vld [vmem:[%s635] sm:$0xff]
        %v637 = vld [vmem:[%s635 + $0x8] sm:$0xff]
        %v638 = vld [vmem:[%s635 + $0x10] sm:$0xff]
        %v639 = vld [vmem:[%s635 + $0x18] sm:$0xff]
        %v640 = vld [vmem:[%s635 + $0x20] sm:$0xff]
        %v641 = vld [vmem:[%s635 + $0x28] sm:$0xff]
        %v642 = vld [vmem:[%s635 + $0x30] sm:$0xff]
        %v643 = vld [vmem:[%s635 + $0x38] sm:$0xff]
        %v644 = vld [vmem:[%s635 + $0x40] sm:$0xff]
        %v645 = vld [vmem:[%s635 + $0x48] sm:$0xff]
        %v646 = vld [vmem:[%s635 + $0x50] sm:$0xff]
        %v647 = vld [vmem:[%s635 + $0x58] sm:$0xff]
        %v648 = vld [vmem:[%s635 + $0x60] sm:$0xff]
        %v649 = vld [vmem:[%s635 + $0x68] sm:$0xff]
        %v650 = vld [vmem:[%s635 + $0x70] sm:$0xff]
        %v651 = vld [vmem:[%s635 + $0x78] sm:$0xff]
        %v652 = vld [vmem:[%s635 + $0x80] sm:$0xff]
        %v653 = vld [vmem:[%s635 + $0x88] sm:$0xff]
        %v654 = vld [vmem:[%s635 + $0x90] sm:$0xff]
        %v655 = vld [vmem:[%s635 + $0x98] sm:$0xff]
        %s656 = scalar_lea.vmem %s4, 1
        %v657 = vld [vmem:[%s656] sm:$0x1]
        %v659 = vlaneseq
        %v660 = vshrl.u32 %v659, 7
        %v661 = vsub.s32 0, %v660
        %v662 = vrot.slane %v657, %v661
        %v664 = vsel %vm417, %v626, 0
        %v666 = vsel %vm417, %v628, 0
        %668 = vmatprep.subr.mxu0 0.0
        %669 = vmatpush1.msra.mxu0 %v651
        %670 = vmatprep.subr.mxu0 0.0
        %671 = vmatpush1.msra.mxu0 %v650
        %672 = vmatprep.subr.mxu0 0.0
        %673 = vmatpush1.msra.mxu0 %v649
        %674 = vmatprep.subr.mxu0 0.0
        %675 = vmatpush1.msra.mxu0 %v648
        %676 = vmatprep.subr.mxu0 0.0
        %677 = vmatpush1.msra.mxu0 %v647
        %678 = vmatprep.subr.mxu0 0.0
        %679 = vmatpush1.msra.mxu0 %v646
        %680 = vmatprep.subr.mxu0 0.0
        %681 = vmatpush1.msra.mxu0 %v645
        %682 = vmatprep.subr.mxu0 0.0
        %683 = vmatpush1.msra.mxu0 %v644
        %684 = vmatprep.subr.mxu0 0.0
        %685 = vmatpush1.msra.mxu0 %v643
        %686 = vmatprep.subr.mxu0 0.0
        %687 = vmatpush1.msra.mxu0 %v642
        %688 = vmatprep.subr.mxu0 0.0
        %689 = vmatpush1.msra.mxu0 %v641
        %690 = vmatprep.subr.mxu0 0.0
        %691 = vmatpush1.msra.mxu0 %v640
        %692 = vmatprep.subr.mxu0 0.0
        %693 = vmatpush1.msra.mxu0 %v639
        %694 = vmatprep.subr.mxu0 0.0
        %695 = vmatpush1.msra.mxu0 %v638
        %696 = vmatprep.subr.mxu0 0.0
        %697 = vmatpush1.msra.mxu0 %v637
        %698 = vmatprep.subr.mxu0 0.0
        %699 = vmatpush1.msra.mxu0 %v636
        %700 = vmatprep.subr.mxu0 0.0
        %701 = vmatpush2.msra.mxu0 0.0
        %702 = vmatprep.subr.mxu0 0.0
        %703 = vmatpush2.msra.mxu0 0.0
        %704 = vmatprep.subr.mxu0 0.0
        %705 = vmatpush2.msra.mxu0 0.0
        %706 = vmatprep.subr.mxu0 0.0
        %707 = vmatpush2.msra.mxu0 0.0
        %708 = vmatprep.subr.mxu0 0.0
        %709 = vmatpush2.msra.mxu0 0.0
        %710 = vmatprep.subr.mxu0 0.0
        %711 = vmatpush2.msra.mxu0 0.0
        %712 = vmatprep.subr.mxu0 0.0
        %713 = vmatpush2.msra.mxu0 0.0
        %714 = vmatprep.subr.mxu0 0.0
        %715 = vmatpush2.msra.mxu0 0.0
        %716 = vmatprep.subr.mxu0 0.0
        %717 = vmatpush2.msra.mxu0 0.0
        %718 = vmatprep.subr.mxu0 0.0
        %719 = vmatpush2.msra.mxu0 0.0
        %720 = vmatprep.subr.mxu0 0.0
        %721 = vmatpush2.msra.mxu0 0.0
        %722 = vmatprep.subr.mxu0 0.0
        %723 = vmatpush2.msra.mxu0 0.0
        %724 = vmatprep.subr.mxu0 0.0
        %725 = vmatpush2.msra.mxu0 %v655
        %726 = vmatprep.subr.mxu0 0.0
        %727 = vmatpush2.msra.mxu0 %v654
        %728 = vmatprep.subr.mxu0 0.0
        %729 = vmatpush2.msra.mxu0 %v653
        %730 = vmatprep.subr.mxu0 0.0
        %731 = vmatpush2.msra.mxu0 %v652
        %732 = vmatprep.mubr.f32.mxu0 %v664
        %733 = vmatmul.mubr.f32.gmra.mxu0 %v633
        %v734 = vpop.f32.mrf.mxu0
        %v735 = vadd.f32 %v662, %v734
        %v736 = vpop.f32.mrf.mxu0
        %737 = vmatprep.mubr.f32.mxu0 %v666
        %738 = vmatmul.mubr.f32.gmra.mxu0 %v634
        %v739 = vpop.f32.mrf.mxu0
        %v740 = vadd.f32 %v662, %v739
        %v741 = vpop.f32.mrf.mxu0
        %742 = vdwg.mxu0
        %v743 = vmax.f32 %v735, 0.0
        %v744 = vmax.f32 %v740, 0.0
        %v745 = vsel %vm417, %v743, 0.0
        %746 = vadd.xlane.f32.xlu0 %v745
        %v747 = vpop.xlane.xlu0 %746
        %v748 = vsel %vm417, %v744, 0.0
        %749 = vadd.xlane.f32.xlu0 %v748
        %v750 = vpop.xlane.xlu0 %749
        %v751 = vmul.f32 %v747, %v540
        %v752 = vmul.f32 %v750, %v540
        %v753 = vsub.f32 %v743, %v751
        %v754 = vsub.f32 %v744, %v752
        %v755 = vmul.f32 %v753, %v753
        %v756 = vmul.f32 %v754, %v754
        %v757 = vsel %vm417, %v755, 0.0
        %758 = vadd.xlane.f32.xlu0 %v757
        %v759 = vpop.xlane.xlu0 %758
        %v760 = vsel %vm417, %v756, 0.0
        %761 = vadd.xlane.f32.xlu0 %v760
        %v762 = vpop.xlane.xlu0 %761
        %v763 = vmul.f32 %v759, %v540
        %v764 = vmul.f32 %v762, %v540
        %v765 = vadd.f32 %v763, 1e-12
        %v766 = vadd.f32 %v764, 1e-12
        %v767 = vrsqrt.pop %v765
        %v768 = vrsqrt.pop %v766
        %v769 = vmul.f32 %v753, %v767
        %v770 = vmul.f32 %v754, %v768
        %s771 = scalar_lea.vmem %s5, 1
        %v772 = vld [vmem:[%s771] sm:$0x1]
        %v774 = vlaneseq
        %v775 = vshrl.u32 %v774, 7
        %v776 = vsub.s32 0, %v775
        %v777 = vrot.slane %v772, %v776
        %v779 = vmul.f32 %v769, %v777
        %v780 = vmul.f32 %v770, %v777
        %s781 = scalar_lea.vmem %s6, 1
        %v782 = vld [vmem:[%s781] sm:$0x1]
        %v784 = vlaneseq
        %v785 = vshrl.u32 %v784, 7
        %v786 = vsub.s32 0, %v785
        %v787 = vrot.slane %v782, %v786
        %v789 = vadd.f32 %v779, %v787
        %v790 = vadd.f32 %v780, %v787
        %v793 = vrot.slane %v789, 6
        %v794 = vrot.slane %v790, 6
        %v795 = vsel %vm364, %v793, %v794
        %v799 = vsel %vm364, 0.0, %v793
        %v800 = vsel %vm364, %v794, 0.0
        %v803 = vrot.slane %v799, 1
        %v804 = vrot.slane %v795, 1
        %v805 = vsel %vm375, %v803, %v804
        %v806 = vrot.slane %v800, 1
        %v807 = vsel %vm375, %v804, %v806
        %808 = vrot.lane.b32.xlu0 %v805, 32
        %v809 = vpop.permute.xlu0 %808
        %810 = vrot.lane.b32.xlu0 %v807, 32
        %v811 = vpop.permute.xlu0 %810
        %v814 = vrot.slane %v799, 2
        %v815 = vrot.slane %v795, 2
        %v816 = vsel %vm387, %v814, %v815
        %v817 = vrot.slane %v800, 2
        %v818 = vsel %vm387, %v815, %v817
        %819 = vrot.lane.b32.xlu0 %v816, 64
        %v820 = vpop.permute.xlu0 %819
        %821 = vrot.lane.b32.xlu0 %v818, 64
        %v822 = vpop.permute.xlu0 %821
        %v825 = vrot.slane %v799, 3
        %v826 = vrot.slane %v795, 3
        %v827 = vsel %vm399, %v825, %v826
        %v828 = vrot.slane %v800, 3
        %v829 = vsel %vm399, %v826, %v828
        %830 = vrot.lane.b32.xlu0 %v827, 96
        %v831 = vpop.permute.xlu0 %830
        %832 = vrot.lane.b32.xlu0 %v829, 96
        %v833 = vpop.permute.xlu0 %832
        %v836 = vrot.slane %v799, 4
        %v837 = vrot.slane %v795, 4
        %v838 = vsel %vm411, %v836, %v837
        %v839 = vrot.slane %v800, 4
        %v840 = vsel %vm411, %v837, %v839
        %v841 = vsel %vm417, %v799, %v809
        %v842 = vsel %vm417, %v795, %v811
        %v843 = vsel %vm420, %v841, %v820
        %v844 = vsel %vm420, %v842, %v822
        %v845 = vsel %vm423, %v843, %v831
        %v846 = vsel %vm423, %v844, %v833
        %s847 = scalar_lea.vmem %s3, 320
        %v848 = vld [vmem:[%s847] sm:$0xff]
        %v849 = vld [vmem:[%s847 + $0x8] sm:$0xff]
        %v850 = vld [vmem:[%s847 + $0x10] sm:$0xff]
        %v851 = vld [vmem:[%s847 + $0x18] sm:$0xff]
        %v852 = vld [vmem:[%s847 + $0x20] sm:$0xff]
        %v853 = vld [vmem:[%s847 + $0x28] sm:$0xff]
        %v854 = vld [vmem:[%s847 + $0x30] sm:$0xff]
        %v855 = vld [vmem:[%s847 + $0x38] sm:$0xff]
        %v856 = vld [vmem:[%s847 + $0x40] sm:$0xff]
        %v857 = vld [vmem:[%s847 + $0x48] sm:$0xff]
        %v858 = vld [vmem:[%s847 + $0x50] sm:$0xff]
        %v859 = vld [vmem:[%s847 + $0x58] sm:$0xff]
        %v860 = vld [vmem:[%s847 + $0x60] sm:$0xff]
        %v861 = vld [vmem:[%s847 + $0x68] sm:$0xff]
        %v862 = vld [vmem:[%s847 + $0x70] sm:$0xff]
        %v863 = vld [vmem:[%s847 + $0x78] sm:$0xff]
        %v864 = vld [vmem:[%s847 + $0x80] sm:$0xff]
        %v865 = vld [vmem:[%s847 + $0x88] sm:$0xff]
        %v866 = vld [vmem:[%s847 + $0x90] sm:$0xff]
        %v867 = vld [vmem:[%s847 + $0x98] sm:$0xff]
        %s868 = scalar_lea.vmem %s4, 2
        %v869 = vld [vmem:[%s868] sm:$0x1]
        %v871 = vlaneseq
        %v872 = vshrl.u32 %v871, 7
        %v873 = vsub.s32 0, %v872
        %v874 = vrot.slane %v869, %v873
        %v876 = vsel %vm417, %v838, 0
        %v878 = vsel %vm417, %v840, 0
        %880 = vmatprep.subr.mxu0 0.0
        %881 = vmatpush1.msra.mxu0 %v863
        %882 = vmatprep.subr.mxu0 0.0
        %883 = vmatpush1.msra.mxu0 %v862
        %884 = vmatprep.subr.mxu0 0.0
        %885 = vmatpush1.msra.mxu0 %v861
        %886 = vmatprep.subr.mxu0 0.0
        %887 = vmatpush1.msra.mxu0 %v860
        %888 = vmatprep.subr.mxu0 0.0
        %889 = vmatpush1.msra.mxu0 %v859
        %890 = vmatprep.subr.mxu0 0.0
        %891 = vmatpush1.msra.mxu0 %v858
        %892 = vmatprep.subr.mxu0 0.0
        %893 = vmatpush1.msra.mxu0 %v857
        %894 = vmatprep.subr.mxu0 0.0
        %895 = vmatpush1.msra.mxu0 %v856
        %896 = vmatprep.subr.mxu0 0.0
        %897 = vmatpush1.msra.mxu0 %v855
        %898 = vmatprep.subr.mxu0 0.0
        %899 = vmatpush1.msra.mxu0 %v854
        %900 = vmatprep.subr.mxu0 0.0
        %901 = vmatpush1.msra.mxu0 %v853
        %902 = vmatprep.subr.mxu0 0.0
        %903 = vmatpush1.msra.mxu0 %v852
        %904 = vmatprep.subr.mxu0 0.0
        %905 = vmatpush1.msra.mxu0 %v851
        %906 = vmatprep.subr.mxu0 0.0
        %907 = vmatpush1.msra.mxu0 %v850
        %908 = vmatprep.subr.mxu0 0.0
        %909 = vmatpush1.msra.mxu0 %v849
        %910 = vmatprep.subr.mxu0 0.0
        %911 = vmatpush1.msra.mxu0 %v848
        %912 = vmatprep.subr.mxu0 0.0
        %913 = vmatpush2.msra.mxu0 0.0
        %914 = vmatprep.subr.mxu0 0.0
        %915 = vmatpush2.msra.mxu0 0.0
        %916 = vmatprep.subr.mxu0 0.0
        %917 = vmatpush2.msra.mxu0 0.0
        %918 = vmatprep.subr.mxu0 0.0
        %919 = vmatpush2.msra.mxu0 0.0
        %920 = vmatprep.subr.mxu0 0.0
        %921 = vmatpush2.msra.mxu0 0.0
        %922 = vmatprep.subr.mxu0 0.0
        %923 = vmatpush2.msra.mxu0 0.0
        %924 = vmatprep.subr.mxu0 0.0
        %925 = vmatpush2.msra.mxu0 0.0
        %926 = vmatprep.subr.mxu0 0.0
        %927 = vmatpush2.msra.mxu0 0.0
        %928 = vmatprep.subr.mxu0 0.0
        %929 = vmatpush2.msra.mxu0 0.0
        %930 = vmatprep.subr.mxu0 0.0
        %931 = vmatpush2.msra.mxu0 0.0
        %932 = vmatprep.subr.mxu0 0.0
        %933 = vmatpush2.msra.mxu0 0.0
        %934 = vmatprep.subr.mxu0 0.0
        %935 = vmatpush2.msra.mxu0 0.0
        %936 = vmatprep.subr.mxu0 0.0
        %937 = vmatpush2.msra.mxu0 %v867
        %938 = vmatprep.subr.mxu0 0.0
        %939 = vmatpush2.msra.mxu0 %v866
        %940 = vmatprep.subr.mxu0 0.0
        %941 = vmatpush2.msra.mxu0 %v865
        %942 = vmatprep.subr.mxu0 0.0
        %943 = vmatpush2.msra.mxu0 %v864
        %944 = vmatprep.mubr.f32.mxu0 %v876
        %945 = vmatmul.mubr.f32.gmra.mxu0 %v845
        %v946 = vpop.f32.mrf.mxu0
        %v947 = vadd.f32 %v874, %v946
        %v948 = vpop.f32.mrf.mxu0
        %949 = vmatprep.mubr.f32.mxu0 %v878
        %950 = vmatmul.mubr.f32.gmra.mxu0 %v846
        %v951 = vpop.f32.mrf.mxu0
        %v952 = vadd.f32 %v874, %v951
        %v953 = vpop.f32.mrf.mxu0
        %954 = vdwg.mxu0
        %v955 = vmax.f32 %v947, 0.0
        %v956 = vmax.f32 %v952, 0.0
        %v957 = vsel %vm417, %v955, 0.0
        %958 = vadd.xlane.f32.xlu0 %v957
        %v959 = vpop.xlane.xlu0 %958
        %v960 = vsel %vm417, %v956, 0.0
        %961 = vadd.xlane.f32.xlu0 %v960
        %v962 = vpop.xlane.xlu0 %961
        %v963 = vmul.f32 %v959, %v540
        %v964 = vmul.f32 %v962, %v540
        %v965 = vsub.f32 %v955, %v963
        %v966 = vsub.f32 %v956, %v964
        %v967 = vmul.f32 %v965, %v965
        %v968 = vmul.f32 %v966, %v966
        %v969 = vsel %vm417, %v967, 0.0
        %970 = vadd.xlane.f32.xlu0 %v969
        %v971 = vpop.xlane.xlu0 %970
        %v972 = vsel %vm417, %v968, 0.0
        %973 = vadd.xlane.f32.xlu0 %v972
        %v974 = vpop.xlane.xlu0 %973
        %v975 = vmul.f32 %v971, %v540
        %v976 = vmul.f32 %v974, %v540
        %v977 = vadd.f32 %v975, 1e-12
        %v978 = vadd.f32 %v976, 1e-12
        %v979 = vrsqrt.pop %v977
        %v980 = vrsqrt.pop %v978
        %v981 = vmul.f32 %v965, %v979
        %v982 = vmul.f32 %v966, %v980
        %s983 = scalar_lea.vmem %s5, 2
        %v984 = vld [vmem:[%s983] sm:$0x1]
        %v986 = vlaneseq
        %v987 = vshrl.u32 %v986, 7
        %v988 = vsub.s32 0, %v987
        %v989 = vrot.slane %v984, %v988
        %v991 = vmul.f32 %v981, %v989
        %v992 = vmul.f32 %v982, %v989
        %s993 = scalar_lea.vmem %s6, 2
        %v994 = vld [vmem:[%s993] sm:$0x1]
        %v996 = vlaneseq
        %v997 = vshrl.u32 %v996, 7
        %v998 = vsub.s32 0, %v997
        %v999 = vrot.slane %v994, %v998
        %v1001 = vadd.f32 %v991, %v999
        %v1002 = vadd.f32 %v992, %v999
        %v1005 = vrot.slane %v1001, 6
        %v1006 = vrot.slane %v1002, 6
        %v1007 = vsel %vm364, %v1005, %v1006
        %v1011 = vsel %vm364, 0.0, %v1005
        %v1012 = vsel %vm364, %v1006, 0.0
        %v1015 = vrot.slane %v1011, 1
        %v1016 = vrot.slane %v1007, 1
        %v1017 = vsel %vm375, %v1015, %v1016
        %v1018 = vrot.slane %v1012, 1
        %v1019 = vsel %vm375, %v1016, %v1018
        %1020 = vrot.lane.b32.xlu0 %v1017, 32
        %v1021 = vpop.permute.xlu0 %1020
        %1022 = vrot.lane.b32.xlu0 %v1019, 32
        %v1023 = vpop.permute.xlu0 %1022
        %v1026 = vrot.slane %v1011, 2
        %v1027 = vrot.slane %v1007, 2
        %v1028 = vsel %vm387, %v1026, %v1027
        %v1029 = vrot.slane %v1012, 2
        %v1030 = vsel %vm387, %v1027, %v1029
        %1031 = vrot.lane.b32.xlu0 %v1028, 64
        %v1032 = vpop.permute.xlu0 %1031
        %1033 = vrot.lane.b32.xlu0 %v1030, 64
        %v1034 = vpop.permute.xlu0 %1033
        %v1037 = vrot.slane %v1011, 3
        %v1038 = vrot.slane %v1007, 3
        %v1039 = vsel %vm399, %v1037, %v1038
        %v1040 = vrot.slane %v1012, 3
        %v1041 = vsel %vm399, %v1038, %v1040
        %1042 = vrot.lane.b32.xlu0 %v1039, 96
        %v1043 = vpop.permute.xlu0 %1042
        %1044 = vrot.lane.b32.xlu0 %v1041, 96
        %v1045 = vpop.permute.xlu0 %1044
        %v1048 = vrot.slane %v1011, 4
        %v1049 = vrot.slane %v1007, 4
        %v1050 = vsel %vm411, %v1048, %v1049
        %v1051 = vrot.slane %v1012, 4
        %v1052 = vsel %vm411, %v1049, %v1051
        %v1053 = vsel %vm417, %v1011, %v1021
        %v1054 = vsel %vm417, %v1007, %v1023
        %v1055 = vsel %vm420, %v1053, %v1032
        %v1056 = vsel %vm420, %v1054, %v1034
        %v1057 = vsel %vm423, %v1055, %v1043
        %v1058 = vsel %vm423, %v1056, %v1045
        %s1059 = scalar_lea.vmem %s3, 480
        %v1060 = vld [vmem:[%s1059] sm:$0xff]
        %v1061 = vld [vmem:[%s1059 + $0x8] sm:$0xff]
        %v1062 = vld [vmem:[%s1059 + $0x10] sm:$0xff]
        %v1063 = vld [vmem:[%s1059 + $0x18] sm:$0xff]
        %v1064 = vld [vmem:[%s1059 + $0x20] sm:$0xff]
        %v1065 = vld [vmem:[%s1059 + $0x28] sm:$0xff]
        %v1066 = vld [vmem:[%s1059 + $0x30] sm:$0xff]
        %v1067 = vld [vmem:[%s1059 + $0x38] sm:$0xff]
        %v1068 = vld [vmem:[%s1059 + $0x40] sm:$0xff]
        %v1069 = vld [vmem:[%s1059 + $0x48] sm:$0xff]
        %v1070 = vld [vmem:[%s1059 + $0x50] sm:$0xff]
        %v1071 = vld [vmem:[%s1059 + $0x58] sm:$0xff]
        %v1072 = vld [vmem:[%s1059 + $0x60] sm:$0xff]
        %v1073 = vld [vmem:[%s1059 + $0x68] sm:$0xff]
        %v1074 = vld [vmem:[%s1059 + $0x70] sm:$0xff]
        %v1075 = vld [vmem:[%s1059 + $0x78] sm:$0xff]
        %v1076 = vld [vmem:[%s1059 + $0x80] sm:$0xff]
        %v1077 = vld [vmem:[%s1059 + $0x88] sm:$0xff]
        %v1078 = vld [vmem:[%s1059 + $0x90] sm:$0xff]
        %v1079 = vld [vmem:[%s1059 + $0x98] sm:$0xff]
        %s1080 = scalar_lea.vmem %s4, 3
        %v1081 = vld [vmem:[%s1080] sm:$0x1]
        %v1083 = vlaneseq
        %v1084 = vshrl.u32 %v1083, 7
        %v1085 = vsub.s32 0, %v1084
        %v1086 = vrot.slane %v1081, %v1085
        %v1088 = vsel %vm417, %v1050, 0
        %v1090 = vsel %vm417, %v1052, 0
        %1092 = vmatprep.subr.mxu0 0.0
        %1093 = vmatpush1.msra.mxu0 %v1075
        %1094 = vmatprep.subr.mxu0 0.0
        %1095 = vmatpush1.msra.mxu0 %v1074
        %1096 = vmatprep.subr.mxu0 0.0
        %1097 = vmatpush1.msra.mxu0 %v1073
        %1098 = vmatprep.subr.mxu0 0.0
        %1099 = vmatpush1.msra.mxu0 %v1072
        %1100 = vmatprep.subr.mxu0 0.0
        %1101 = vmatpush1.msra.mxu0 %v1071
        %1102 = vmatprep.subr.mxu0 0.0
        %1103 = vmatpush1.msra.mxu0 %v1070
        %1104 = vmatprep.subr.mxu0 0.0
        %1105 = vmatpush1.msra.mxu0 %v1069
        %1106 = vmatprep.subr.mxu0 0.0
        %1107 = vmatpush1.msra.mxu0 %v1068
        %1108 = vmatprep.subr.mxu0 0.0
        %1109 = vmatpush1.msra.mxu0 %v1067
        %1110 = vmatprep.subr.mxu0 0.0
        %1111 = vmatpush1.msra.mxu0 %v1066
        %1112 = vmatprep.subr.mxu0 0.0
        %1113 = vmatpush1.msra.mxu0 %v1065
        %1114 = vmatprep.subr.mxu0 0.0
        %1115 = vmatpush1.msra.mxu0 %v1064
        %1116 = vmatprep.subr.mxu0 0.0
        %1117 = vmatpush1.msra.mxu0 %v1063
        %1118 = vmatprep.subr.mxu0 0.0
        %1119 = vmatpush1.msra.mxu0 %v1062
        %1120 = vmatprep.subr.mxu0 0.0
        %1121 = vmatpush1.msra.mxu0 %v1061
        %1122 = vmatprep.subr.mxu0 0.0
        %1123 = vmatpush1.msra.mxu0 %v1060
        %1124 = vmatprep.subr.mxu0 0.0
        %1125 = vmatpush2.msra.mxu0 0.0
        %1126 = vmatprep.subr.mxu0 0.0
        %1127 = vmatpush2.msra.mxu0 0.0
        %1128 = vmatprep.subr.mxu0 0.0
        %1129 = vmatpush2.msra.mxu0 0.0
        %1130 = vmatprep.subr.mxu0 0.0
        %1131 = vmatpush2.msra.mxu0 0.0
        %1132 = vmatprep.subr.mxu0 0.0
        %1133 = vmatpush2.msra.mxu0 0.0
        %1134 = vmatprep.subr.mxu0 0.0
        %1135 = vmatpush2.msra.mxu0 0.0
        %1136 = vmatprep.subr.mxu0 0.0
        %1137 = vmatpush2.msra.mxu0 0.0
        %1138 = vmatprep.subr.mxu0 0.0
        %1139 = vmatpush2.msra.mxu0 0.0
        %1140 = vmatprep.subr.mxu0 0.0
        %1141 = vmatpush2.msra.mxu0 0.0
        %1142 = vmatprep.subr.mxu0 0.0
        %1143 = vmatpush2.msra.mxu0 0.0
        %1144 = vmatprep.subr.mxu0 0.0
        %1145 = vmatpush2.msra.mxu0 0.0
        %1146 = vmatprep.subr.mxu0 0.0
        %1147 = vmatpush2.msra.mxu0 0.0
        %1148 = vmatprep.subr.mxu0 0.0
        %1149 = vmatpush2.msra.mxu0 %v1079
        %1150 = vmatprep.subr.mxu0 0.0
        %1151 = vmatpush2.msra.mxu0 %v1078
        %1152 = vmatprep.subr.mxu0 0.0
        %1153 = vmatpush2.msra.mxu0 %v1077
        %1154 = vmatprep.subr.mxu0 0.0
        %1155 = vmatpush2.msra.mxu0 %v1076
        %1156 = vmatprep.mubr.f32.mxu0 %v1088
        %1157 = vmatmul.mubr.f32.gmra.mxu0 %v1057
        %v1158 = vpop.f32.mrf.mxu0
        %v1159 = vadd.f32 %v1086, %v1158
        %v1160 = vpop.f32.mrf.mxu0
        %1161 = vmatprep.mubr.f32.mxu0 %v1090
        %1162 = vmatmul.mubr.f32.gmra.mxu0 %v1058
        %v1163 = vpop.f32.mrf.mxu0
        %v1164 = vadd.f32 %v1086, %v1163
        %v1165 = vpop.f32.mrf.mxu0
        %1166 = vdwg.mxu0
        %v1167 = vmax.f32 %v1159, 0.0
        %v1168 = vmax.f32 %v1164, 0.0
        %v1169 = vsel %vm417, %v1167, 0.0
        %1170 = vadd.xlane.f32.xlu0 %v1169
        %v1171 = vpop.xlane.xlu0 %1170
        %v1172 = vsel %vm417, %v1168, 0.0
        %1173 = vadd.xlane.f32.xlu0 %v1172
        %v1174 = vpop.xlane.xlu0 %1173
        %v1175 = vmul.f32 %v1171, %v540
        %v1176 = vmul.f32 %v1174, %v540
        %v1177 = vsub.f32 %v1167, %v1175
        %v1178 = vsub.f32 %v1168, %v1176
        %v1179 = vmul.f32 %v1177, %v1177
        %v1180 = vmul.f32 %v1178, %v1178
        %v1181 = vsel %vm417, %v1179, 0.0
        %1182 = vadd.xlane.f32.xlu0 %v1181
        %v1183 = vpop.xlane.xlu0 %1182
        %v1184 = vsel %vm417, %v1180, 0.0
        %1185 = vadd.xlane.f32.xlu0 %v1184
        %v1186 = vpop.xlane.xlu0 %1185
        %v1187 = vmul.f32 %v1183, %v540
        %v1188 = vmul.f32 %v1186, %v540
        %v1189 = vadd.f32 %v1187, 1e-12
        %v1190 = vadd.f32 %v1188, 1e-12
        %v1191 = vrsqrt.pop %v1189
        %v1192 = vrsqrt.pop %v1190
        %v1193 = vmul.f32 %v1177, %v1191
        %v1194 = vmul.f32 %v1178, %v1192
        %s1195 = scalar_lea.vmem %s5, 3
        %v1196 = vld [vmem:[%s1195] sm:$0x1]
        %v1198 = vlaneseq
        %v1199 = vshrl.u32 %v1198, 7
        %v1200 = vsub.s32 0, %v1199
        %v1201 = vrot.slane %v1196, %v1200
        %v1203 = vmul.f32 %v1193, %v1201
        %v1204 = vmul.f32 %v1194, %v1201
        %s1205 = scalar_lea.vmem %s6, 3
        %v1206 = vld [vmem:[%s1205] sm:$0x1]
        %v1208 = vlaneseq
        %v1209 = vshrl.u32 %v1208, 7
        %v1210 = vsub.s32 0, %v1209
        %v1211 = vrot.slane %v1206, %v1210
        %v1213 = vadd.f32 %v1203, %v1211
        %v1214 = vadd.f32 %v1204, %v1211
        %v1217 = vrot.slane %v1213, 6
        %v1218 = vrot.slane %v1214, 6
        %v1219 = vsel %vm364, %v1217, %v1218
        %v1223 = vsel %vm364, 0.0, %v1217
        %v1224 = vsel %vm364, %v1218, 0.0
        %v1227 = vrot.slane %v1223, 1
        %v1228 = vrot.slane %v1219, 1
        %v1229 = vsel %vm375, %v1227, %v1228
        %v1230 = vrot.slane %v1224, 1
        %v1231 = vsel %vm375, %v1228, %v1230
        %1232 = vrot.lane.b32.xlu0 %v1229, 32
        %v1233 = vpop.permute.xlu0 %1232
        %1234 = vrot.lane.b32.xlu0 %v1231, 32
        %v1235 = vpop.permute.xlu0 %1234
        %v1238 = vrot.slane %v1223, 2
        %v1239 = vrot.slane %v1219, 2
        %v1240 = vsel %vm387, %v1238, %v1239
        %v1241 = vrot.slane %v1224, 2
        %v1242 = vsel %vm387, %v1239, %v1241
        %1243 = vrot.lane.b32.xlu0 %v1240, 64
        %v1244 = vpop.permute.xlu0 %1243
        %1245 = vrot.lane.b32.xlu0 %v1242, 64
        %v1246 = vpop.permute.xlu0 %1245
        %v1249 = vrot.slane %v1223, 3
        %v1250 = vrot.slane %v1219, 3
        %v1251 = vsel %vm399, %v1249, %v1250
        %v1252 = vrot.slane %v1224, 3
        %v1253 = vsel %vm399, %v1250, %v1252
        %1254 = vrot.lane.b32.xlu0 %v1251, 96
        %v1255 = vpop.permute.xlu0 %1254
        %1256 = vrot.lane.b32.xlu0 %v1253, 96
        %v1257 = vpop.permute.xlu0 %1256
        %v1260 = vrot.slane %v1223, 4
        %v1261 = vrot.slane %v1219, 4
        %v1262 = vsel %vm411, %v1260, %v1261
        %v1263 = vrot.slane %v1224, 4
        %v1264 = vsel %vm411, %v1261, %v1263
        %v1265 = vsel %vm417, %v1223, %v1233
        %v1266 = vsel %vm417, %v1219, %v1235
        %v1267 = vsel %vm420, %v1265, %v1244
        %v1268 = vsel %vm420, %v1266, %v1246
        %v1269 = vsel %vm423, %v1267, %v1255
        %v1270 = vsel %vm423, %v1268, %v1257
        %s1271 = scalar_lea.vmem %s3, 640
        %v1272 = vld [vmem:[%s1271] sm:$0xff]
        %v1273 = vld [vmem:[%s1271 + $0x8] sm:$0xff]
        %v1274 = vld [vmem:[%s1271 + $0x10] sm:$0xff]
        %v1275 = vld [vmem:[%s1271 + $0x18] sm:$0xff]
        %v1276 = vld [vmem:[%s1271 + $0x20] sm:$0xff]
        %v1277 = vld [vmem:[%s1271 + $0x28] sm:$0xff]
        %v1278 = vld [vmem:[%s1271 + $0x30] sm:$0xff]
        %v1279 = vld [vmem:[%s1271 + $0x38] sm:$0xff]
        %v1280 = vld [vmem:[%s1271 + $0x40] sm:$0xff]
        %v1281 = vld [vmem:[%s1271 + $0x48] sm:$0xff]
        %v1282 = vld [vmem:[%s1271 + $0x50] sm:$0xff]
        %v1283 = vld [vmem:[%s1271 + $0x58] sm:$0xff]
        %v1284 = vld [vmem:[%s1271 + $0x60] sm:$0xff]
        %v1285 = vld [vmem:[%s1271 + $0x68] sm:$0xff]
        %v1286 = vld [vmem:[%s1271 + $0x70] sm:$0xff]
        %v1287 = vld [vmem:[%s1271 + $0x78] sm:$0xff]
        %v1288 = vld [vmem:[%s1271 + $0x80] sm:$0xff]
        %v1289 = vld [vmem:[%s1271 + $0x88] sm:$0xff]
        %v1290 = vld [vmem:[%s1271 + $0x90] sm:$0xff]
        %v1291 = vld [vmem:[%s1271 + $0x98] sm:$0xff]
        %s1292 = scalar_lea.vmem %s4, 4
        %v1293 = vld [vmem:[%s1292] sm:$0x1]
        %v1295 = vlaneseq
        %v1296 = vshrl.u32 %v1295, 7
        %v1297 = vsub.s32 0, %v1296
        %v1298 = vrot.slane %v1293, %v1297
        %v1300 = vsel %vm417, %v1262, 0
        %v1302 = vsel %vm417, %v1264, 0
        %1304 = vmatprep.subr.mxu0 0.0
        %1305 = vmatpush1.msra.mxu0 %v1287
        %1306 = vmatprep.subr.mxu0 0.0
        %1307 = vmatpush1.msra.mxu0 %v1286
        %1308 = vmatprep.subr.mxu0 0.0
        %1309 = vmatpush1.msra.mxu0 %v1285
        %1310 = vmatprep.subr.mxu0 0.0
        %1311 = vmatpush1.msra.mxu0 %v1284
        %1312 = vmatprep.subr.mxu0 0.0
        %1313 = vmatpush1.msra.mxu0 %v1283
        %1314 = vmatprep.subr.mxu0 0.0
        %1315 = vmatpush1.msra.mxu0 %v1282
        %1316 = vmatprep.subr.mxu0 0.0
        %1317 = vmatpush1.msra.mxu0 %v1281
        %1318 = vmatprep.subr.mxu0 0.0
        %1319 = vmatpush1.msra.mxu0 %v1280
        %1320 = vmatprep.subr.mxu0 0.0
        %1321 = vmatpush1.msra.mxu0 %v1279
        %1322 = vmatprep.subr.mxu0 0.0
        %1323 = vmatpush1.msra.mxu0 %v1278
        %1324 = vmatprep.subr.mxu0 0.0
        %1325 = vmatpush1.msra.mxu0 %v1277
        %1326 = vmatprep.subr.mxu0 0.0
        %1327 = vmatpush1.msra.mxu0 %v1276
        %1328 = vmatprep.subr.mxu0 0.0
        %1329 = vmatpush1.msra.mxu0 %v1275
        %1330 = vmatprep.subr.mxu0 0.0
        %1331 = vmatpush1.msra.mxu0 %v1274
        %1332 = vmatprep.subr.mxu0 0.0
        %1333 = vmatpush1.msra.mxu0 %v1273
        %1334 = vmatprep.subr.mxu0 0.0
        %1335 = vmatpush1.msra.mxu0 %v1272
        %1336 = vmatprep.subr.mxu0 0.0
        %1337 = vmatpush2.msra.mxu0 0.0
        %1338 = vmatprep.subr.mxu0 0.0
        %1339 = vmatpush2.msra.mxu0 0.0
        %1340 = vmatprep.subr.mxu0 0.0
        %1341 = vmatpush2.msra.mxu0 0.0
        %1342 = vmatprep.subr.mxu0 0.0
        %1343 = vmatpush2.msra.mxu0 0.0
        %1344 = vmatprep.subr.mxu0 0.0
        %1345 = vmatpush2.msra.mxu0 0.0
        %1346 = vmatprep.subr.mxu0 0.0
        %1347 = vmatpush2.msra.mxu0 0.0
        %1348 = vmatprep.subr.mxu0 0.0
        %1349 = vmatpush2.msra.mxu0 0.0
        %1350 = vmatprep.subr.mxu0 0.0
        %1351 = vmatpush2.msra.mxu0 0.0
        %1352 = vmatprep.subr.mxu0 0.0
        %1353 = vmatpush2.msra.mxu0 0.0
        %1354 = vmatprep.subr.mxu0 0.0
        %1355 = vmatpush2.msra.mxu0 0.0
        %1356 = vmatprep.subr.mxu0 0.0
        %1357 = vmatpush2.msra.mxu0 0.0
        %1358 = vmatprep.subr.mxu0 0.0
        %1359 = vmatpush2.msra.mxu0 0.0
        %1360 = vmatprep.subr.mxu0 0.0
        %1361 = vmatpush2.msra.mxu0 %v1291
        %1362 = vmatprep.subr.mxu0 0.0
        %1363 = vmatpush2.msra.mxu0 %v1290
        %1364 = vmatprep.subr.mxu0 0.0
        %1365 = vmatpush2.msra.mxu0 %v1289
        %1366 = vmatprep.subr.mxu0 0.0
        %1367 = vmatpush2.msra.mxu0 %v1288
        %1368 = vmatprep.mubr.f32.mxu0 %v1300
        %1369 = vmatmul.mubr.f32.gmra.mxu0 %v1269
        %v1370 = vpop.f32.mrf.mxu0
        %v1371 = vadd.f32 %v1298, %v1370
        %v1372 = vpop.f32.mrf.mxu0
        %1373 = vmatprep.mubr.f32.mxu0 %v1302
        %1374 = vmatmul.mubr.f32.gmra.mxu0 %v1270
        %v1375 = vpop.f32.mrf.mxu0
        %v1376 = vadd.f32 %v1298, %v1375
        %v1377 = vpop.f32.mrf.mxu0
        %1378 = vdwg.mxu0
        %v1379 = vmax.f32 %v1371, 0.0
        %v1380 = vmax.f32 %v1376, 0.0
        %v1381 = vsel %vm417, %v1379, 0.0
        %1382 = vadd.xlane.f32.xlu0 %v1381
        %v1383 = vpop.xlane.xlu0 %1382
        %v1384 = vsel %vm417, %v1380, 0.0
        %1385 = vadd.xlane.f32.xlu0 %v1384
        %v1386 = vpop.xlane.xlu0 %1385
        %v1387 = vmul.f32 %v1383, %v540
        %v1388 = vmul.f32 %v1386, %v540
        %v1389 = vsub.f32 %v1379, %v1387
        %v1390 = vsub.f32 %v1380, %v1388
        %v1391 = vmul.f32 %v1389, %v1389
        %v1392 = vmul.f32 %v1390, %v1390
        %v1393 = vsel %vm417, %v1391, 0.0
        %1394 = vadd.xlane.f32.xlu0 %v1393
        %v1395 = vpop.xlane.xlu0 %1394
        %v1396 = vsel %vm417, %v1392, 0.0
        %1397 = vadd.xlane.f32.xlu0 %v1396
        %v1398 = vpop.xlane.xlu0 %1397
        %v1399 = vmul.f32 %v1395, %v540
        %v1400 = vmul.f32 %v1398, %v540
        %v1401 = vadd.f32 %v1399, 1e-12
        %v1402 = vadd.f32 %v1400, 1e-12
        %v1403 = vrsqrt.pop %v1401
        %v1404 = vrsqrt.pop %v1402
        %v1405 = vmul.f32 %v1389, %v1403
        %v1406 = vmul.f32 %v1390, %v1404
        %s1407 = scalar_lea.vmem %s5, 4
        %v1408 = vld [vmem:[%s1407] sm:$0x1]
        %v1410 = vlaneseq
        %v1411 = vshrl.u32 %v1410, 7
        %v1412 = vsub.s32 0, %v1411
        %v1413 = vrot.slane %v1408, %v1412
        %v1415 = vmul.f32 %v1405, %v1413
        %v1416 = vmul.f32 %v1406, %v1413
        %s1417 = scalar_lea.vmem %s6, 4
        %v1418 = vld [vmem:[%s1417] sm:$0x1]
        %v1420 = vlaneseq
        %v1421 = vshrl.u32 %v1420, 7
        %v1422 = vsub.s32 0, %v1421
        %v1423 = vrot.slane %v1418, %v1422
        %v1425 = vadd.f32 %v1415, %v1423
        %v1426 = vadd.f32 %v1416, %v1423
        %v1427 = vld [vmem:[%s7] sm:$0xff]
        %v1428 = vld [vmem:[%s7 + $0x8] sm:$0xff]
        %v1429 = vld [vmem:[%s7 + $0x10] sm:$0xff]
        %v1430 = vld [vmem:[%s7 + $0x18] sm:$0xff]
        %v1431 = vld [vmem:[%s8] sm:$0x1]
        %v1433 = vlaneseq
        %v1434 = vshrl.u32 %v1433, 7
        %v1435 = vsub.s32 0, %v1434
        %v1436 = vrot.slane %v1431, %v1435
        %v1439 = vsel %vm417, %v1425, 0
        %v1442 = vsel %vm417, %v1426, 0
        %1444 = vmatprep.subr.mxu0 0.0
        %1445 = vmatpush1.msra.mxu0 0.0
        %1446 = vmatprep.subr.mxu0 0.0
        %1447 = vmatpush1.msra.mxu0 0.0
        %1448 = vmatprep.subr.mxu0 0.0
        %1449 = vmatpush1.msra.mxu0 0.0
        %1450 = vmatprep.subr.mxu0 0.0
        %1451 = vmatpush1.msra.mxu0 0.0
        %1452 = vmatprep.subr.mxu0 0.0
        %1453 = vmatpush1.msra.mxu0 0.0
        %1454 = vmatprep.subr.mxu0 0.0
        %1455 = vmatpush1.msra.mxu0 0.0
        %1456 = vmatprep.subr.mxu0 0.0
        %1457 = vmatpush1.msra.mxu0 0.0
        %1458 = vmatprep.subr.mxu0 0.0
        %1459 = vmatpush1.msra.mxu0 0.0
        %1460 = vmatprep.subr.mxu0 0.0
        %1461 = vmatpush1.msra.mxu0 0.0
        %1462 = vmatprep.subr.mxu0 0.0
        %1463 = vmatpush1.msra.mxu0 0.0
        %1464 = vmatprep.subr.mxu0 0.0
        %1465 = vmatpush1.msra.mxu0 0.0
        %1466 = vmatprep.subr.mxu0 0.0
        %1467 = vmatpush1.msra.mxu0 0.0
        %1468 = vmatprep.subr.mxu0 0.0
        %1469 = vmatpush1.msra.mxu0 %v1430
        %1470 = vmatprep.subr.mxu0 0.0
        %1471 = vmatpush1.msra.mxu0 %v1429
        %1472 = vmatprep.subr.mxu0 0.0
        %1473 = vmatpush1.msra.mxu0 %v1428
        %1474 = vmatprep.subr.mxu0 0.0
        %1475 = vmatpush1.msra.mxu0 %v1427
        %1476 = vmatprep.subr.mxu0 0.0
        %1477 = vmatpush2.msra.mxu0 0.0
        %1478 = vmatprep.subr.mxu0 0.0
        %1479 = vmatpush2.msra.mxu0 0.0
        %1480 = vmatprep.subr.mxu0 0.0
        %1481 = vmatpush2.msra.mxu0 0.0
        %1482 = vmatprep.subr.mxu0 0.0
        %1483 = vmatpush2.msra.mxu0 0.0
        %1484 = vmatprep.subr.mxu0 0.0
        %1485 = vmatpush2.msra.mxu0 0.0
        %1486 = vmatprep.subr.mxu0 0.0
        %1487 = vmatpush2.msra.mxu0 0.0
        %1488 = vmatprep.subr.mxu0 0.0
        %1489 = vmatpush2.msra.mxu0 0.0
        %1490 = vmatprep.subr.mxu0 0.0
        %1491 = vmatpush2.msra.mxu0 0.0
        %1492 = vmatprep.subr.mxu0 0.0
        %1493 = vmatpush2.msra.mxu0 0.0
        %1494 = vmatprep.subr.mxu0 0.0
        %1495 = vmatpush2.msra.mxu0 0.0
        %1496 = vmatprep.subr.mxu0 0.0
        %1497 = vmatpush2.msra.mxu0 0.0
        %1498 = vmatprep.subr.mxu0 0.0
        %1499 = vmatpush2.msra.mxu0 0.0
        %1500 = vmatprep.subr.mxu0 0.0
        %1501 = vmatpush2.msra.mxu0 0.0
        %1502 = vmatprep.subr.mxu0 0.0
        %1503 = vmatpush2.msra.mxu0 0.0
        %1504 = vmatprep.subr.mxu0 0.0
        %1505 = vmatpush2.msra.mxu0 0.0
        %1506 = vmatprep.subr.mxu0 0.0
        %1507 = vmatpush2.msra.mxu0 0.0
        %1508 = vmatprep.mubr.f32.mxu0 0.0
        %1509 = vmatmul.mubr.f32.gmra.mxu0 %v1439
        %v1510 = vpop.f32.mrf.mxu0
        %v1511 = vadd.f32 %v1436, %v1510
        %v1512 = vpop.f32.mrf.mxu0
        %1513 = vmatprep.mubr.f32.mxu0 0.0
        %1514 = vmatmul.mubr.f32.gmra.mxu0 %v1442
        %v1515 = vpop.f32.mrf.mxu0
        %v1516 = vadd.f32 %v1436, %v1515
        %v1517 = vpop.f32.mrf.mxu0
        %1518 = vdwg.mxu0
        %1519 = vst [vmem:[%s341] sm:$0xff] %v1511
        %1520 = vst [vmem:[%s341 + $0x8] sm:$0xff] %v1516
        %s1521 = sand.u32 %s231, 1
        %s1522 = scalar_lea.sflag [#allocation4], %s1521
        %s1523 = sand.u32 %s231, 1
        %s1524 = smul.addr %s1523, 16
        %s1525 = scalar_lea.vmem [#allocation3], %s1524
        // Predicated region
        $region57: #{tpu_custom_call.1} parent=55 // pred_check
          %p1526 = pneg %p241
        $region58: #{tpu_custom_call.1} parent=55 // pred_check_branch
          %1528 = sbr.rel (%p1526) target = $region60
        $region59: #{tpu_custom_call.1} parent=55 // pred_region
          %s1530 = ssub.s32 256, 256
          %1531 = vsyncadd %s1522, %s1530
          %s1532 = smul.addr %s24, 2
          %s1533 = smul.addr %s1532, 128
          %s1534 = scalar_lea.hbm %s9, %s1533
          %s1535 = sshll.u32 %s1525, 4
          %s1536 = int_to_ptr.vmem [resolvable:$true] %s1535
          %1541 = dma.vmem_to_hbm [thread:$0]  %s1536, 256, %s1534, %s1522, 128, 128, 8
        $region60: #{tpu_custom_call.1} parent=55 // pred_fallthru
          _
      $region56: #{tpu_custom_call.1} parent=5 // pred_fallthru
        _
      %p1542 = scmp.le.s32.totalorder 2, %s19
      // Predicated region
      $region61: #{tpu_custom_call.1} parent=5 // pred_check
        %p1543 = pneg %p1542
      $region62: #{tpu_custom_call.1} parent=5 // pred_check_branch
        %1545 = sbr.rel (%p1543) target = $region64
      $region63: #{tpu_custom_call.1} parent=5 // pred_region
        %s1546 = ssub.s32 %s19, 2
        // Predicated region
        $region65: #{tpu_custom_call.1} parent=63 // pred_check
          %p1547 = pneg %p247
        $region66: #{tpu_custom_call.1} parent=63 // pred_check_branch
          %1549 = sbr.rel (%p1547) target = $region68
        $region67: #{tpu_custom_call.1} parent=63 // pred_region
          %s1550 = sand.u32 %s232, 1
          %s1551 = scalar_lea.sflag [#allocation4], %s1550
          %s1552 = sand.u32 %s232, 1
          %s1553 = smul.addr %s1552, 16
          %s1554 = scalar_lea.vmem [#allocation3], %s1553
          %1555 = dma.done %s1551, 256
        $region68: #{tpu_custom_call.1} parent=63 // pred_fallthru
          _
      $region64: #{tpu_custom_call.1} parent=5 // pred_fallthru
        _
    $region6: #{tpu_custom_call.1} parent=1 // loop_footer
      %s23 = sadd.s32 1, %s19
    $region7: #{tpu_custom_call.1} parent=1 // loop_footer_branch
      %18 = sbr.rel target = $region3
    $region8: #{tpu_custom_call.1} parent=1 // loop_exit
      _
    %1556 = vsyncpa [#allocation4], 1
    %s1557 = scalar_lea.sflag [#allocation4], 1
    %1558 = vsyncpa %s1557, 1

</llo_original>
